<compile_context>
chip_gen: v7x
topology: tpu7x:2x2x1
jax: 0.10.0
libtpu: 0.0.40
codegen_flags: <defaults>
</compile_context>

<pallas_src>
import functools

import jax
import jax.numpy as jnp
from jax import lax
from jax.experimental import pallas as pl
from jax.experimental.pallas import tpu as pltpu  # noqa: F401  (TPU backend)


# --------------------------- Fused MHA kernel --------------------------------
def _fused_mha_kernel(x1_ref, x2_ref, x3_ref, w_ref, b_ref, o_ref,
                      *, num_heads, scale, batch, s_q, s_kv):
    d_model = x1_ref.shape[-1]
    dh = d_model // num_heads

    x1 = x1_ref[...]                    # (B*Sq,  D)
    x2 = x2_ref[...]                    # (B*Skv, D)
    x3 = x3_ref[...]                    # (B*Skv, D)

    wq, wk, wv, wo = w_ref[0], w_ref[1], w_ref[2], w_ref[3]   # (D, D) each
    bq, bk, bv, bo = b_ref[0], b_ref[1], b_ref[2], b_ref[3]   # (1, D) each

    # Fused projections over all batch rows at once (no HBM round trips).
    q = jnp.dot(x1, wq, preferred_element_type=jnp.float32) + bq
    k = jnp.dot(x2, wk, preferred_element_type=jnp.float32) + bk
    v = jnp.dot(x3, wv, preferred_element_type=jnp.float32) + bv
    q = q * scale                       # fold softmax scale into q

    # (1, D) lane masks, one per head, hoisted out of the loops below.
    lane = lax.broadcasted_iota(jnp.int32, (1, d_model), 1)
    head_mask = [((lane >= h * dh) & (lane < (h + 1) * dh)).astype(jnp.float32)
                 for h in range(num_heads)]

    # Contract last dims of both operands: q_h @ k_h^T without an explicit
    # transpose.  Off-head lanes of q are zeroed, so the full-depth
    # contraction is exactly the per-head score.
    dnums = (((1,), (1,)), ((), ()))

    out_rows = []
    for b in range(batch):                                  # static, tiny
        qb = q[b * s_q:(b + 1) * s_q, :]                    # (Sq,  D)
        kb = k[b * s_kv:(b + 1) * s_kv, :]                  # (Skv, D)
        vb = v[b * s_kv:(b + 1) * s_kv, :]                  # (Skv, D)
        ob = jnp.zeros((s_q, d_model), jnp.float32)         # lane-dense slab
        for h in range(num_heads):                          # static, tiny
            m = head_mask[h]
            s = lax.dot_general(qb * m, kb, dnums,
                                preferred_element_type=jnp.float32)  # (Sq, Skv)
            s = s - jnp.max(s, axis=-1, keepdims=True)
            p = jnp.exp(s)
            p = p / jnp.sum(p, axis=-1, keepdims=True)       # exact softmax
            # Masked V: head h's output lands directly at its lane offset in
            # the (Sq, D) slab -- no concat / no 8-lane MXU outputs.
            ob = ob + jnp.dot(p, vb * m, preferred_element_type=jnp.float32)
        out_rows.append(ob)

    # Sublane-aligned stack back to (B*Sq, D), then one fused output GEMM.
    o = jnp.concatenate(out_rows, axis=0)
    y = jnp.dot(o, wo, preferred_element_type=jnp.float32) + bo
    o_ref[...] = y.astype(o_ref.dtype)


def mha_forward(params, x1, x2, x3, num_heads, d_model):
    assert d_model % num_heads == 0
    B, Sq, _ = x1.shape
    Skv = x2.shape[1]
    scale = d_model ** (-0.5)

    # Fold batch into rows for the projection GEMMs.
    x1f = x1.reshape(B * Sq, d_model)
    x2f = x2.reshape(B * Skv, d_model)
    x3f = x3.reshape(B * Skv, d_model)

    # Pack weights/biases: 11 inputs -> 5.
    w_packed = jnp.stack([params.wq, params.wk, params.wv, params.wo])   # (4, D, D)
    b_packed = jnp.stack([params.bq, params.bk, params.bv, params.bo]
                         ).reshape(4, 1, d_model)                        # (4, 1, D)

    kern = functools.partial(_fused_mha_kernel, num_heads=num_heads,
                             scale=scale, batch=B, s_q=Sq, s_kv=Skv)

    # No grid: the whole problem fits comfortably in VMEM; every array is a
    # single full-block VMEM resident, avoiding per-grid-step overhead.
    out = pl.pallas_call(
        kern,
        out_shape=jax.ShapeDtypeStruct((B * Sq, d_model), x1.dtype),
    )(x1f, x2f, x3f, w_packed, b_packed)
    return out.reshape(B, Sq, d_model)


# ------------------------------ Parameters ------------------------------------
class MHAParams:
    def __init__(self, key, d_model):
        ks = jax.random.split(key, 8)
        lim = 1.0 / (d_model ** 0.5)

        def u(k, shape):
            return jax.random.uniform(k, shape, jnp.float32, -lim, lim)

        self.wq, self.bq = u(ks[0], (d_model, d_model)), u(ks[1], (d_model,))
        self.wk, self.bk = u(ks[2], (d_model, d_model)), u(ks[3], (d_model,))
        self.wv, self.bv = u(ks[4], (d_model, d_model)), u(ks[5], (d_model,))
        self.wo, self.bo = u(ks[6], (d_model, d_model)), u(ks[7], (d_model,))


# ------------------------------ JAX reference ----------------------------------
def reference_forward(params, x1, x2, x3, num_heads, d_model):
    B, Sq, _ = x1.shape
    Skv = x2.shape[1]
    dh = d_model // num_heads
    scale = d_model ** (-0.5)
    q = x1 @ params.wq + params.bq
    k = x2 @ params.wk + params.bk
    v = x3 @ params.wv + params.bv
    q = q.reshape(B, Sq, num_heads, dh).transpose(0, 2, 1, 3)
    k = k.reshape(B, Skv, num_heads, dh).transpose(0, 2, 1, 3)
    v = v.reshape(B, Skv, num_heads, dh).transpose(0, 2, 1, 3)
    s = jnp.einsum("bhqd,bhkd->bhqk", q, k) * scale
    p = jax.nn.softmax(s, axis=-1)
    o = jnp.einsum("bhqk,bhkd->bhqd", p, v)
    o = o.transpose(0, 2, 1, 3).reshape(B, Sq, d_model)
    return o @ params.wo + params.bo


if __name__ == "__main__":
    # Small, deterministic shapes consistent with the module's constraints.
    B, Sq, Skv = 2, 8, 8
    d_model, num_heads = 32, 4
    assert d_model % num_heads == 0

    key = jax.random.PRNGKey(0)
    kx1, kx2, kx3, kp = jax.random.split(key, 4)
    x1 = jax.random.normal(kx1, (B, Sq, d_model), jnp.float32)
    x2 = jax.random.normal(kx2, (B, Skv, d_model), jnp.float32)
    x3 = jax.random.normal(kx3, (B, Skv, d_model), jnp.float32)
    params = MHAParams(kp, d_model)

    out = mha_forward(params, x1, x2, x3, num_heads, d_model)
    out = jax.block_until_ready(out)

    ref = reference_forward(params, x1, x2, x3, num_heads, d_model)
    assert out.shape == (B, Sq, d_model)
    # Tolerance covers MXU f32 multi-pass matmuls vs. XLA default-precision
    # einsums in the reference (softmax itself is exact: max-shift + divide).
    assert jnp.allclose(out, ref, atol=2e-3, rtol=2e-3)

    print("KERNEL_OK")
</pallas_src>

<mosaic_0001>
module attributes {stable_mosaic.version = 11 : i64} {
  func.func @_fused_mha_kernel(%arg0: memref<16x32xf32, #tpu.memory_space<vmem>>, %arg1: memref<16x32xf32, #tpu.memory_space<vmem>>, %arg2: memref<16x32xf32, #tpu.memory_space<vmem>>, %arg3: memref<4x32x32xf32, #tpu.memory_space<vmem>>, %arg4: memref<4x1x32xf32, #tpu.memory_space<vmem>>, %arg5: memref<16x32xf32, #tpu.memory_space<vmem>>) attributes {dimension_semantics = [], scalar_prefetch = 0 : i64, scratch_operands = 0 : i64, tpu.core_type = #tpu.core_type<tc>} {
    %c0 = arith.constant 0 : index
    %c0_0 = arith.constant 0 : index
    %0 = vector.load %arg0[%c0, %c0_0] : memref<16x32xf32, #tpu.memory_space<vmem>>, vector<16x32xf32>
    %c0_1 = arith.constant 0 : index
    %c0_2 = arith.constant 0 : index
    %1 = vector.load %arg1[%c0_1, %c0_2] : memref<16x32xf32, #tpu.memory_space<vmem>>, vector<16x32xf32>
    %c0_3 = arith.constant 0 : index
    %c0_4 = arith.constant 0 : index
    %2 = vector.load %arg2[%c0_3, %c0_4] : memref<16x32xf32, #tpu.memory_space<vmem>>, vector<16x32xf32>
    %c0_5 = arith.constant 0 : index
    %c0_6 = arith.constant 0 : index
    %c0_7 = arith.constant 0 : index
    %3 = vector.load %arg3[%c0_5, %c0_6, %c0_7] : memref<4x32x32xf32, #tpu.memory_space<vmem>>, vector<1x32x32xf32>
    %4 = vector.shape_cast %3 : vector<1x32x32xf32> to vector<32x32xf32>
    %c1 = arith.constant 1 : index
    %c0_8 = arith.constant 0 : index
    %c0_9 = arith.constant 0 : index
    %5 = vector.load %arg3[%c1, %c0_8, %c0_9] : memref<4x32x32xf32, #tpu.memory_space<vmem>>, vector<1x32x32xf32>
    %6 = vector.shape_cast %5 : vector<1x32x32xf32> to vector<32x32xf32>
    %c2 = arith.constant 2 : index
    %c0_10 = arith.constant 0 : index
    %c0_11 = arith.constant 0 : index
    %7 = vector.load %arg3[%c2, %c0_10, %c0_11] : memref<4x32x32xf32, #tpu.memory_space<vmem>>, vector<1x32x32xf32>
    %8 = vector.shape_cast %7 : vector<1x32x32xf32> to vector<32x32xf32>
    %c3 = arith.constant 3 : index
    %c0_12 = arith.constant 0 : index
    %c0_13 = arith.constant 0 : index
    %9 = vector.load %arg3[%c3, %c0_12, %c0_13] : memref<4x32x32xf32, #tpu.memory_space<vmem>>, vector<1x32x32xf32>
    %10 = vector.shape_cast %9 : vector<1x32x32xf32> to vector<32x32xf32>
    %c0_14 = arith.constant 0 : index
    %c0_15 = arith.constant 0 : index
    %c0_16 = arith.constant 0 : index
    %11 = vector.load %arg4[%c0_14, %c0_15, %c0_16] : memref<4x1x32xf32, #tpu.memory_space<vmem>>, vector<1x1x32xf32>
    %12 = vector.shape_cast %11 : vector<1x1x32xf32> to vector<1x32xf32>
    %c1_17 = arith.constant 1 : index
    %c0_18 = arith.constant 0 : index
    %c0_19 = arith.constant 0 : index
    %13 = vector.load %arg4[%c1_17, %c0_18, %c0_19] : memref<4x1x32xf32, #tpu.memory_space<vmem>>, vector<1x1x32xf32>
    %14 = vector.shape_cast %13 : vector<1x1x32xf32> to vector<1x32xf32>
    %c2_20 = arith.constant 2 : index
    %c0_21 = arith.constant 0 : index
    %c0_22 = arith.constant 0 : index
    %15 = vector.load %arg4[%c2_20, %c0_21, %c0_22] : memref<4x1x32xf32, #tpu.memory_space<vmem>>, vector<1x1x32xf32>
    %16 = vector.shape_cast %15 : vector<1x1x32xf32> to vector<1x32xf32>
    %c3_23 = arith.constant 3 : index
    %c0_24 = arith.constant 0 : index
    %c0_25 = arith.constant 0 : index
    %17 = vector.load %arg4[%c3_23, %c0_24, %c0_25] : memref<4x1x32xf32, #tpu.memory_space<vmem>>, vector<1x1x32xf32>
    %18 = vector.shape_cast %17 : vector<1x1x32xf32> to vector<1x32xf32>
    %cst = arith.constant dense<0.000000e+00> : vector<16x32xf32>
    %19 = tpu.matmul %0, %4, %cst {dimension_numbers = #tpu.dot_dimension_numbers<[1], [0], [0], [1], [0, 0, 1, 1], [], []>} : vector<16x32xf32>, vector<32x32xf32>, vector<16x32xf32> -> vector<16x32xf32>
    %20 = vector.broadcast %12 : vector<1x32xf32> to vector<16x32xf32>
    %21 = arith.addf %19, %20 : vector<16x32xf32>
    %cst_26 = arith.constant dense<0.000000e+00> : vector<16x32xf32>
    %22 = tpu.matmul %1, %6, %cst_26 {dimension_numbers = #tpu.dot_dimension_numbers<[1], [0], [0], [1], [0, 0, 1, 1], [], []>} : vector<16x32xf32>, vector<32x32xf32>, vector<16x32xf32> -> vector<16x32xf32>
    %23 = vector.broadcast %14 : vector<1x32xf32> to vector<16x32xf32>
    %24 = arith.addf %22, %23 : vector<16x32xf32>
    %cst_27 = arith.constant dense<0.000000e+00> : vector<16x32xf32>
    %25 = tpu.matmul %2, %8, %cst_27 {dimension_numbers = #tpu.dot_dimension_numbers<[1], [0], [0], [1], [0, 0, 1, 1], [], []>} : vector<16x32xf32>, vector<32x32xf32>, vector<16x32xf32> -> vector<16x32xf32>
    %26 = vector.broadcast %16 : vector<1x32xf32> to vector<16x32xf32>
    %27 = arith.addf %25, %26 : vector<16x32xf32>
    %cst_28 = arith.constant 0.176776692 : f32
    %28 = vector.broadcast %cst_28 : f32 to vector<16x32xf32>
    %29 = arith.mulf %21, %28 : vector<16x32xf32>
    %30 = tpu.iota {dimensions = array<i32: 1>} : vector<1x32xi32>
    %c0_i32 = arith.constant 0 : i32
    %31 = vector.broadcast %c0_i32 : i32 to vector<1x32xi32>
    %32 = arith.cmpi sge, %30, %31 : vector<1x32xi32>
    %c8_i32 = arith.constant 8 : i32
    %33 = vector.broadcast %c8_i32 : i32 to vector<1x32xi32>
    %34 = arith.cmpi slt, %30, %33 : vector<1x32xi32>
    %35 = arith.andi %32, %34 : vector<1x32xi1>
    %36 = arith.extui %35 : vector<1x32xi1> to vector<1x32xi32>
    %37 = arith.sitofp %36 : vector<1x32xi32> to vector<1x32xf32>
    %c8_i32_29 = arith.constant 8 : i32
    %38 = vector.broadcast %c8_i32_29 : i32 to vector<1x32xi32>
    %39 = arith.cmpi sge, %30, %38 : vector<1x32xi32>
    %c16_i32 = arith.constant 16 : i32
    %40 = vector.broadcast %c16_i32 : i32 to vector<1x32xi32>
    %41 = arith.cmpi slt, %30, %40 : vector<1x32xi32>
    %42 = arith.andi %39, %41 : vector<1x32xi1>
    %43 = arith.extui %42 : vector<1x32xi1> to vector<1x32xi32>
    %44 = arith.sitofp %43 : vector<1x32xi32> to vector<1x32xf32>
    %c16_i32_30 = arith.constant 16 : i32
    %45 = vector.broadcast %c16_i32_30 : i32 to vector<1x32xi32>
    %46 = arith.cmpi sge, %30, %45 : vector<1x32xi32>
    %c24_i32 = arith.constant 24 : i32
    %47 = vector.broadcast %c24_i32 : i32 to vector<1x32xi32>
    %48 = arith.cmpi slt, %30, %47 : vector<1x32xi32>
    %49 = arith.andi %46, %48 : vector<1x32xi1>
    %50 = arith.extui %49 : vector<1x32xi1> to vector<1x32xi32>
    %51 = arith.sitofp %50 : vector<1x32xi32> to vector<1x32xf32>
    %c24_i32_31 = arith.constant 24 : i32
    %52 = vector.broadcast %c24_i32_31 : i32 to vector<1x32xi32>
    %53 = arith.cmpi sge, %30, %52 : vector<1x32xi32>
    %c32_i32 = arith.constant 32 : i32
    %54 = vector.broadcast %c32_i32 : i32 to vector<1x32xi32>
    %55 = arith.cmpi slt, %30, %54 : vector<1x32xi32>
    %56 = arith.andi %53, %55 : vector<1x32xi1>
    %57 = arith.extui %56 : vector<1x32xi1> to vector<1x32xi32>
    %58 = arith.sitofp %57 : vector<1x32xi32> to vector<1x32xf32>
    %59 = vector.extract_strided_slice %29 {offsets = [0, 0], sizes = [8, 32], strides = [1, 1]} : vector<16x32xf32> to vector<8x32xf32>
    %60 = vector.extract_strided_slice %24 {offsets = [0, 0], sizes = [8, 32], strides = [1, 1]} : vector<16x32xf32> to vector<8x32xf32>
    %61 = vector.extract_strided_slice %27 {offsets = [0, 0], sizes = [8, 32], strides = [1, 1]} : vector<16x32xf32> to vector<8x32xf32>
    %cst_32 = arith.constant 0.000000e+00 : f32
    %62 = vector.broadcast %cst_32 : f32 to vector<8x32xf32>
    %63 = vector.broadcast %37 : vector<1x32xf32> to vector<8x32xf32>
    %64 = arith.mulf %59, %63 : vector<8x32xf32>
    %cst_33 = arith.constant dense<0.000000e+00> : vector<8x8xf32>
    %65 = tpu.matmul %64, %60, %cst_33 {dimension_numbers = #tpu.dot_dimension_numbers<[1], [1], [0], [0], [0, 0, 1, 0], [], []>} : vector<8x32xf32>, vector<8x32xf32>, vector<8x8xf32> -> vector<8x8xf32>
    %cst_34 = arith.constant dense<0xFF800000> : vector<8xf32>
    %66 = vector.multi_reduction <maximumf>, %65, %cst_34 [1] : vector<8x8xf32> to vector<8xf32>
    %67 = vector.shape_cast %66 : vector<8xf32> to vector<8x1xf32>
    %68 = vector.broadcast %67 : vector<8x1xf32> to vector<8x8xf32>
    %69 = arith.subf %65, %68 : vector<8x8xf32>
    %70 = math.exp %69 : vector<8x8xf32>
    %cst_35 = arith.constant dense<0.000000e+00> : vector<8xf32>
    %71 = vector.multi_reduction <add>, %70, %cst_35 [1] : vector<8x8xf32> to vector<8xf32>
    %72 = vector.shape_cast %71 : vector<8xf32> to vector<8x1xf32>
    %73 = vector.broadcast %72 : vector<8x1xf32> to vector<8x8xf32>
    %74 = arith.divf %70, %73 : vector<8x8xf32>
    %75 = vector.broadcast %37 : vector<1x32xf32> to vector<8x32xf32>
    %76 = arith.mulf %61, %75 : vector<8x32xf32>
    %cst_36 = arith.constant dense<0.000000e+00> : vector<8x32xf32>
    %77 = tpu.matmul %74, %76, %cst_36 {dimension_numbers = #tpu.dot_dimension_numbers<[1], [0], [0], [1], [0, 0, 1, 1], [], []>} : vector<8x8xf32>, vector<8x32xf32>, vector<8x32xf32> -> vector<8x32xf32>
    %78 = arith.addf %62, %77 : vector<8x32xf32>
    %79 = vector.broadcast %44 : vector<1x32xf32> to vector<8x32xf32>
    %80 = arith.mulf %59, %79 : vector<8x32xf32>
    %cst_37 = arith.constant dense<0.000000e+00> : vector<8x8xf32>
    %81 = tpu.matmul %80, %60, %cst_37 {dimension_numbers = #tpu.dot_dimension_numbers<[1], [1], [0], [0], [0, 0, 1, 0], [], []>} : vector<8x32xf32>, vector<8x32xf32>, vector<8x8xf32> -> vector<8x8xf32>
    %cst_38 = arith.constant dense<0xFF800000> : vector<8xf32>
    %82 = vector.multi_reduction <maximumf>, %81, %cst_38 [1] : vector<8x8xf32> to vector<8xf32>
    %83 = vector.shape_cast %82 : vector<8xf32> to vector<8x1xf32>
    %84 = vector.broadcast %83 : vector<8x1xf32> to vector<8x8xf32>
    %85 = arith.subf %81, %84 : vector<8x8xf32>
    %86 = math.exp %85 : vector<8x8xf32>
    %cst_39 = arith.constant dense<0.000000e+00> : vector<8xf32>
    %87 = vector.multi_reduction <add>, %86, %cst_39 [1] : vector<8x8xf32> to vector<8xf32>
    %88 = vector.shape_cast %87 : vector<8xf32> to vector<8x1xf32>
    %89 = vector.broadcast %88 : vector<8x1xf32> to vector<8x8xf32>
    %90 = arith.divf %86, %89 : vector<8x8xf32>
    %91 = vector.broadcast %44 : vector<1x32xf32> to vector<8x32xf32>
    %92 = arith.mulf %61, %91 : vector<8x32xf32>
    %cst_40 = arith.constant dense<0.000000e+00> : vector<8x32xf32>
    %93 = tpu.matmul %90, %92, %cst_40 {dimension_numbers = #tpu.dot_dimension_numbers<[1], [0], [0], [1], [0, 0, 1, 1], [], []>} : vector<8x8xf32>, vector<8x32xf32>, vector<8x32xf32> -> vector<8x32xf32>
    %94 = arith.addf %78, %93 : vector<8x32xf32>
    %95 = vector.broadcast %51 : vector<1x32xf32> to vector<8x32xf32>
    %96 = arith.mulf %59, %95 : vector<8x32xf32>
    %cst_41 = arith.constant dense<0.000000e+00> : vector<8x8xf32>
    %97 = tpu.matmul %96, %60, %cst_41 {dimension_numbers = #tpu.dot_dimension_numbers<[1], [1], [0], [0], [0, 0, 1, 0], [], []>} : vector<8x32xf32>, vector<8x32xf32>, vector<8x8xf32> -> vector<8x8xf32>
    %cst_42 = arith.constant dense<0xFF800000> : vector<8xf32>
    %98 = vector.multi_reduction <maximumf>, %97, %cst_42 [1] : vector<8x8xf32> to vector<8xf32>
    %99 = vector.shape_cast %98 : vector<8xf32> to vector<8x1xf32>
    %100 = vector.broadcast %99 : vector<8x1xf32> to vector<8x8xf32>
    %101 = arith.subf %97, %100 : vector<8x8xf32>
    %102 = math.exp %101 : vector<8x8xf32>
    %cst_43 = arith.constant dense<0.000000e+00> : vector<8xf32>
    %103 = vector.multi_reduction <add>, %102, %cst_43 [1] : vector<8x8xf32> to vector<8xf32>
    %104 = vector.shape_cast %103 : vector<8xf32> to vector<8x1xf32>
    %105 = vector.broadcast %104 : vector<8x1xf32> to vector<8x8xf32>
    %106 = arith.divf %102, %105 : vector<8x8xf32>
    %107 = vector.broadcast %51 : vector<1x32xf32> to vector<8x32xf32>
    %108 = arith.mulf %61, %107 : vector<8x32xf32>
    %cst_44 = arith.constant dense<0.000000e+00> : vector<8x32xf32>
    %109 = tpu.matmul %106, %108, %cst_44 {dimension_numbers = #tpu.dot_dimension_numbers<[1], [0], [0], [1], [0, 0, 1, 1], [], []>} : vector<8x8xf32>, vector<8x32xf32>, vector<8x32xf32> -> vector<8x32xf32>
    %110 = arith.addf %94, %109 : vector<8x32xf32>
    %111 = vector.broadcast %58 : vector<1x32xf32> to vector<8x32xf32>
    %112 = arith.mulf %59, %111 : vector<8x32xf32>
    %cst_45 = arith.constant dense<0.000000e+00> : vector<8x8xf32>
    %113 = tpu.matmul %112, %60, %cst_45 {dimension_numbers = #tpu.dot_dimension_numbers<[1], [1], [0], [0], [0, 0, 1, 0], [], []>} : vector<8x32xf32>, vector<8x32xf32>, vector<8x8xf32> -> vector<8x8xf32>
    %cst_46 = arith.constant dense<0xFF800000> : vector<8xf32>
    %114 = vector.multi_reduction <maximumf>, %113, %cst_46 [1] : vector<8x8xf32> to vector<8xf32>
    %115 = vector.shape_cast %114 : vector<8xf32> to vector<8x1xf32>
    %116 = vector.broadcast %115 : vector<8x1xf32> to vector<8x8xf32>
    %117 = arith.subf %113, %116 : vector<8x8xf32>
    %118 = math.exp %117 : vector<8x8xf32>
    %cst_47 = arith.constant dense<0.000000e+00> : vector<8xf32>
    %119 = vector.multi_reduction <add>, %118, %cst_47 [1] : vector<8x8xf32> to vector<8xf32>
    %120 = vector.shape_cast %119 : vector<8xf32> to vector<8x1xf32>
    %121 = vector.broadcast %120 : vector<8x1xf32> to vector<8x8xf32>
    %122 = arith.divf %118, %121 : vector<8x8xf32>
    %123 = vector.broadcast %58 : vector<1x32xf32> to vector<8x32xf32>
    %124 = arith.mulf %61, %123 : vector<8x32xf32>
    %cst_48 = arith.constant dense<0.000000e+00> : vector<8x32xf32>
    %125 = tpu.matmul %122, %124, %cst_48 {dimension_numbers = #tpu.dot_dimension_numbers<[1], [0], [0], [1], [0, 0, 1, 1], [], []>} : vector<8x8xf32>, vector<8x32xf32>, vector<8x32xf32> -> vector<8x32xf32>
    %126 = arith.addf %110, %125 : vector<8x32xf32>
    %127 = vector.extract_strided_slice %29 {offsets = [8, 0], sizes = [8, 32], strides = [1, 1]} : vector<16x32xf32> to vector<8x32xf32>
    %128 = vector.extract_strided_slice %24 {offsets = [8, 0], sizes = [8, 32], strides = [1, 1]} : vector<16x32xf32> to vector<8x32xf32>
    %129 = vector.extract_strided_slice %27 {offsets = [8, 0], sizes = [8, 32], strides = [1, 1]} : vector<16x32xf32> to vector<8x32xf32>
    %cst_49 = arith.constant 0.000000e+00 : f32
    %130 = vector.broadcast %cst_49 : f32 to vector<8x32xf32>
    %131 = vector.broadcast %37 : vector<1x32xf32> to vector<8x32xf32>
    %132 = arith.mulf %127, %131 : vector<8x32xf32>
    %cst_50 = arith.constant dense<0.000000e+00> : vector<8x8xf32>
    %133 = tpu.matmul %132, %128, %cst_50 {dimension_numbers = #tpu.dot_dimension_numbers<[1], [1], [0], [0], [0, 0, 1, 0], [], []>} : vector<8x32xf32>, vector<8x32xf32>, vector<8x8xf32> -> vector<8x8xf32>
    %cst_51 = arith.constant dense<0xFF800000> : vector<8xf32>
    %134 = vector.multi_reduction <maximumf>, %133, %cst_51 [1] : vector<8x8xf32> to vector<8xf32>
    %135 = vector.shape_cast %134 : vector<8xf32> to vector<8x1xf32>
    %136 = vector.broadcast %135 : vector<8x1xf32> to vector<8x8xf32>
    %137 = arith.subf %133, %136 : vector<8x8xf32>
    %138 = math.exp %137 : vector<8x8xf32>
    %cst_52 = arith.constant dense<0.000000e+00> : vector<8xf32>
    %139 = vector.multi_reduction <add>, %138, %cst_52 [1] : vector<8x8xf32> to vector<8xf32>
    %140 = vector.shape_cast %139 : vector<8xf32> to vector<8x1xf32>
    %141 = vector.broadcast %140 : vector<8x1xf32> to vector<8x8xf32>
    %142 = arith.divf %138, %141 : vector<8x8xf32>
    %143 = vector.broadcast %37 : vector<1x32xf32> to vector<8x32xf32>
    %144 = arith.mulf %129, %143 : vector<8x32xf32>
    %cst_53 = arith.constant dense<0.000000e+00> : vector<8x32xf32>
    %145 = tpu.matmul %142, %144, %cst_53 {dimension_numbers = #tpu.dot_dimension_numbers<[1], [0], [0], [1], [0, 0, 1, 1], [], []>} : vector<8x8xf32>, vector<8x32xf32>, vector<8x32xf32> -> vector<8x32xf32>
    %146 = arith.addf %130, %145 : vector<8x32xf32>
    %147 = vector.broadcast %44 : vector<1x32xf32> to vector<8x32xf32>
    %148 = arith.mulf %127, %147 : vector<8x32xf32>
    %cst_54 = arith.constant dense<0.000000e+00> : vector<8x8xf32>
    %149 = tpu.matmul %148, %128, %cst_54 {dimension_numbers = #tpu.dot_dimension_numbers<[1], [1], [0], [0], [0, 0, 1, 0], [], []>} : vector<8x32xf32>, vector<8x32xf32>, vector<8x8xf32> -> vector<8x8xf32>
    %cst_55 = arith.constant dense<0xFF800000> : vector<8xf32>
    %150 = vector.multi_reduction <maximumf>, %149, %cst_55 [1] : vector<8x8xf32> to vector<8xf32>
    %151 = vector.shape_cast %150 : vector<8xf32> to vector<8x1xf32>
    %152 = vector.broadcast %151 : vector<8x1xf32> to vector<8x8xf32>
    %153 = arith.subf %149, %152 : vector<8x8xf32>
    %154 = math.exp %153 : vector<8x8xf32>
    %cst_56 = arith.constant dense<0.000000e+00> : vector<8xf32>
    %155 = vector.multi_reduction <add>, %154, %cst_56 [1] : vector<8x8xf32> to vector<8xf32>
    %156 = vector.shape_cast %155 : vector<8xf32> to vector<8x1xf32>
    %157 = vector.broadcast %156 : vector<8x1xf32> to vector<8x8xf32>
    %158 = arith.divf %154, %157 : vector<8x8xf32>
    %159 = vector.broadcast %44 : vector<1x32xf32> to vector<8x32xf32>
    %160 = arith.mulf %129, %159 : vector<8x32xf32>
    %cst_57 = arith.constant dense<0.000000e+00> : vector<8x32xf32>
    %161 = tpu.matmul %158, %160, %cst_57 {dimension_numbers = #tpu.dot_dimension_numbers<[1], [0], [0], [1], [0, 0, 1, 1], [], []>} : vector<8x8xf32>, vector<8x32xf32>, vector<8x32xf32> -> vector<8x32xf32>
    %162 = arith.addf %146, %161 : vector<8x32xf32>
    %163 = vector.broadcast %51 : vector<1x32xf32> to vector<8x32xf32>
    %164 = arith.mulf %127, %163 : vector<8x32xf32>
    %cst_58 = arith.constant dense<0.000000e+00> : vector<8x8xf32>
    %165 = tpu.matmul %164, %128, %cst_58 {dimension_numbers = #tpu.dot_dimension_numbers<[1], [1], [0], [0], [0, 0, 1, 0], [], []>} : vector<8x32xf32>, vector<8x32xf32>, vector<8x8xf32> -> vector<8x8xf32>
    %cst_59 = arith.constant dense<0xFF800000> : vector<8xf32>
    %166 = vector.multi_reduction <maximumf>, %165, %cst_59 [1] : vector<8x8xf32> to vector<8xf32>
    %167 = vector.shape_cast %166 : vector<8xf32> to vector<8x1xf32>
    %168 = vector.broadcast %167 : vector<8x1xf32> to vector<8x8xf32>
    %169 = arith.subf %165, %168 : vector<8x8xf32>
    %170 = math.exp %169 : vector<8x8xf32>
    %cst_60 = arith.constant dense<0.000000e+00> : vector<8xf32>
    %171 = vector.multi_reduction <add>, %170, %cst_60 [1] : vector<8x8xf32> to vector<8xf32>
    %172 = vector.shape_cast %171 : vector<8xf32> to vector<8x1xf32>
    %173 = vector.broadcast %172 : vector<8x1xf32> to vector<8x8xf32>
    %174 = arith.divf %170, %173 : vector<8x8xf32>
    %175 = vector.broadcast %51 : vector<1x32xf32> to vector<8x32xf32>
    %176 = arith.mulf %129, %175 : vector<8x32xf32>
    %cst_61 = arith.constant dense<0.000000e+00> : vector<8x32xf32>
    %177 = tpu.matmul %174, %176, %cst_61 {dimension_numbers = #tpu.dot_dimension_numbers<[1], [0], [0], [1], [0, 0, 1, 1], [], []>} : vector<8x8xf32>, vector<8x32xf32>, vector<8x32xf32> -> vector<8x32xf32>
    %178 = arith.addf %162, %177 : vector<8x32xf32>
    %179 = vector.broadcast %58 : vector<1x32xf32> to vector<8x32xf32>
    %180 = arith.mulf %127, %179 : vector<8x32xf32>
    %cst_62 = arith.constant dense<0.000000e+00> : vector<8x8xf32>
    %181 = tpu.matmul %180, %128, %cst_62 {dimension_numbers = #tpu.dot_dimension_numbers<[1], [1], [0], [0], [0, 0, 1, 0], [], []>} : vector<8x32xf32>, vector<8x32xf32>, vector<8x8xf32> -> vector<8x8xf32>
    %cst_63 = arith.constant dense<0xFF800000> : vector<8xf32>
    %182 = vector.multi_reduction <maximumf>, %181, %cst_63 [1] : vector<8x8xf32> to vector<8xf32>
    %183 = vector.shape_cast %182 : vector<8xf32> to vector<8x1xf32>
    %184 = vector.broadcast %183 : vector<8x1xf32> to vector<8x8xf32>
    %185 = arith.subf %181, %184 : vector<8x8xf32>
    %186 = math.exp %185 : vector<8x8xf32>
    %cst_64 = arith.constant dense<0.000000e+00> : vector<8xf32>
    %187 = vector.multi_reduction <add>, %186, %cst_64 [1] : vector<8x8xf32> to vector<8xf32>
    %188 = vector.shape_cast %187 : vector<8xf32> to vector<8x1xf32>
    %189 = vector.broadcast %188 : vector<8x1xf32> to vector<8x8xf32>
    %190 = arith.divf %186, %189 : vector<8x8xf32>
    %191 = vector.broadcast %58 : vector<1x32xf32> to vector<8x32xf32>
    %192 = arith.mulf %129, %191 : vector<8x32xf32>
    %cst_65 = arith.constant dense<0.000000e+00> : vector<8x32xf32>
    %193 = tpu.matmul %190, %192, %cst_65 {dimension_numbers = #tpu.dot_dimension_numbers<[1], [0], [0], [1], [0, 0, 1, 1], [], []>} : vector<8x8xf32>, vector<8x32xf32>, vector<8x32xf32> -> vector<8x32xf32>
    %194 = arith.addf %178, %193 : vector<8x32xf32>
    %195 = tpu.concatenate %126, %194 in 0 : vector<8x32xf32>, vector<8x32xf32> -> vector<16x32xf32>
    %cst_66 = arith.constant dense<0.000000e+00> : vector<16x32xf32>
    %196 = tpu.matmul %195, %10, %cst_66 {dimension_numbers = #tpu.dot_dimension_numbers<[1], [0], [0], [1], [0, 0, 1, 1], [], []>} : vector<16x32xf32>, vector<32x32xf32>, vector<16x32xf32> -> vector<16x32xf32>
    %197 = vector.broadcast %18 : vector<1x32xf32> to vector<16x32xf32>
    %198 = arith.addf %196, %197 : vector<16x32xf32>
    %c0_67 = arith.constant 0 : index
    %c0_68 = arith.constant 0 : index
    %199 = vector.load %arg5[%c0_67, %c0_68] : memref<16x32xf32, #tpu.memory_space<vmem>>, vector<16x32xf32>
    tpu.vector_store %arg5[%c0_67, %c0_68], %198 {strides = array<i32>} : memref<16x32xf32, #tpu.memory_space<vmem>>, vector<16x32xf32>,
    return
  }
}

</mosaic_0001>

<llo_original>
// kernel: tpu_custom_call.1
$region0: #{tpu_custom_call.1}
  #allocation0 [shape = 'u32[]', space=smem, size = 0x4, offset = 0x4, fixed_abs, tag = 'smem constant byte address 0x4 - core index']
  #allocation1 [shape = 'u32[144,128]{1,0:T(1,128)}', space=vmem, size = 0x12000, scoped, tag = 'internal scratch']
  %s0 = inlined_call_operand.hbm [shape: f32[16,32], index: 0, kind: input, shape index: {}]
  %s1 = inlined_call_operand.hbm [shape: f32[16,32], index: 1, kind: input, shape index: {}]
  %s2 = inlined_call_operand.hbm [shape: f32[16,32], index: 2, kind: input, shape index: {}]
  %s3 = inlined_call_operand.hbm [shape: f32[4,32,32], index: 3, kind: input, shape index: {}]
  %s4 = inlined_call_operand.vmem [shape: f32[4,1,32], index: 4, kind: input, shape index: {}]
  %s5 = inlined_call_operand.hbm [shape: f32[16,32], index: 5, kind: output, shape index: {}]
  %s6 = sld [smem:[#allocation0]]
  $region46: #{tpu_custom_call.1} parent=0
    _
  %s8 = ssub.s32 1, %s6
  %s9 = scalar_select 0, %s8, %s6
  $region1: #{tpu_custom_call.1} parent=0
    #allocation2 [shape = 'u8[8192]{0}', space=vmem, size = 0x2000, scoped, tag = 'input window, operand 0, single buffered']
    #allocation3 [shape = 's32[1]{0}', space=sflag, size = 0x4, scoped, tag = 'scoped memory for tpu_custom_call.1']
    #allocation4 [shape = 's32[1]{0}', space=sflag, size = 0x4, scoped, tag = 'scoped memory for tpu_custom_call.1']
    #allocation5 [shape = 'u8[8192]{0}', space=vmem, size = 0x2000, scoped, tag = 'input window, operand 1, single buffered']
    #allocation6 [shape = 's32[1]{0}', space=sflag, size = 0x4, scoped, tag = 'scoped memory for tpu_custom_call.1']
    #allocation7 [shape = 'u8[8192]{0}', space=vmem, size = 0x2000, scoped, tag = 'input window, operand 2, single buffered']
    #allocation8 [shape = 'u8[65536]{0}', space=vmem, size = 0x10000, scoped, tag = 'input window, operand 3, single buffered']
    #allocation9 [shape = 's32[1]{0}', space=sflag, size = 0x4, scoped, tag = 'scoped memory for tpu_custom_call.1']
    #allocation10 [shape = 'u8[8192]{0}', space=vmem, size = 0x2000, scoped, tag = 'output window, operand 0, single buffered']
    %10 = vsyncpa [#allocation3], 0
    %11 = vsyncpa [#allocation6], 0
    %12 = vsyncpa [#allocation9], 0
    %13 = vsyncpa [#allocation4], 0
    // Predicated region
    $region2: #{tpu_custom_call.1} parent=1 // pred_check
      _
    $region3: #{tpu_custom_call.1} parent=1 // pred_check_branch
      %15 = sbr.rel (0) target = $region5
    $region4: #{tpu_custom_call.1} parent=1 // pred_region
      %s17 = ssub.s32 256, 256
      %18 = vsyncadd [#allocation3], %s17
      %s19 = sshll.u32 [#allocation2], 4
      %s20 = int_to_ptr.vmem [resolvable:$true] %s19
      %25 = dma.hbm_to_vmem [thread:$0]  %s0, 256, %s20, [#allocation3], 128, 128, 8
    $region5: #{tpu_custom_call.1} parent=1 // pred_fallthru
      _
    // Predicated region
    $region6: #{tpu_custom_call.1} parent=1 // pred_check
      _
    $region7: #{tpu_custom_call.1} parent=1 // pred_check_branch
      %27 = sbr.rel (0) target = $region9
    $region8: #{tpu_custom_call.1} parent=1 // pred_region
      %s29 = ssub.s32 256, 256
      %30 = vsyncadd [#allocation6], %s29
      %s31 = sshll.u32 [#allocation5], 4
      %s32 = int_to_ptr.vmem [resolvable:$true] %s31
      %37 = dma.hbm_to_vmem [thread:$0]  %s1, 256, %s32, [#allocation6], 128, 128, 8
    $region9: #{tpu_custom_call.1} parent=1 // pred_fallthru
      _
    // Predicated region
    $region10: #{tpu_custom_call.1} parent=1 // pred_check
      _
    $region11: #{tpu_custom_call.1} parent=1 // pred_check_branch
      %39 = sbr.rel (0) target = $region13
    $region12: #{tpu_custom_call.1} parent=1 // pred_region
      %s41 = ssub.s32 256, 256
      %42 = vsyncadd [#allocation6], %s41
      %s43 = sshll.u32 [#allocation7], 4
      %s44 = int_to_ptr.vmem [resolvable:$true] %s43
      %49 = dma.hbm_to_vmem [thread:$0]  %s2, 256, %s44, [#allocation6], 128, 128, 8
    $region13: #{tpu_custom_call.1} parent=1 // pred_fallthru
      _
    // Predicated region
    $region14: #{tpu_custom_call.1} parent=1 // pred_check
      _
    $region15: #{tpu_custom_call.1} parent=1 // pred_check_branch
      %51 = sbr.rel (0) target = $region17
    $region16: #{tpu_custom_call.1} parent=1 // pred_region
      %s53 = ssub.s32 2048, 2048
      %54 = vsyncadd [#allocation9], %s53
      %s55 = sshll.u32 [#allocation8], 4
      %s56 = int_to_ptr.vmem [resolvable:$true] %s55
      %61 = dma.hbm_to_vmem [thread:$0]  %s3, 2048, %s56, [#allocation9], 128, 128, 8
    $region17: #{tpu_custom_call.1} parent=1 // pred_fallthru
      _
    // Predicated region
    $region18: #{tpu_custom_call.1} parent=1 // pred_check
      _
    $region19: #{tpu_custom_call.1} parent=1 // pred_check_branch
      %63 = sbr.rel (0) target = $region21
    $region20: #{tpu_custom_call.1} parent=1 // pred_region
      _
    $region21: #{tpu_custom_call.1} parent=1 // pred_fallthru
      _
    // Predicated region
    $region22: #{tpu_custom_call.1} parent=1 // pred_check
      _
    $region23: #{tpu_custom_call.1} parent=1 // pred_check_branch
      %65 = sbr.rel (0) target = $region25
    $region24: #{tpu_custom_call.1} parent=1 // pred_region
      %66 = dma.done [#allocation3], 256
    $region25: #{tpu_custom_call.1} parent=1 // pred_fallthru
      _
    // Predicated region
    $region26: #{tpu_custom_call.1} parent=1 // pred_check
      _
    $region27: #{tpu_custom_call.1} parent=1 // pred_check_branch
      %68 = sbr.rel (0) target = $region29
    $region28: #{tpu_custom_call.1} parent=1 // pred_region
      %69 = dma.done [#allocation6], 256
    $region29: #{tpu_custom_call.1} parent=1 // pred_fallthru
      _
    // Predicated region
    $region30: #{tpu_custom_call.1} parent=1 // pred_check
      _
    $region31: #{tpu_custom_call.1} parent=1 // pred_check_branch
      %71 = sbr.rel (0) target = $region33
    $region32: #{tpu_custom_call.1} parent=1 // pred_region
      %72 = dma.done [#allocation6], 256
    $region33: #{tpu_custom_call.1} parent=1 // pred_fallthru
      _
    // Predicated region
    $region34: #{tpu_custom_call.1} parent=1 // pred_check
      _
    $region35: #{tpu_custom_call.1} parent=1 // pred_check_branch
      %74 = sbr.rel (0) target = $region37
    $region36: #{tpu_custom_call.1} parent=1 // pred_region
      %75 = dma.done [#allocation9], 2048
    $region37: #{tpu_custom_call.1} parent=1 // pred_fallthru
      _
    %v76 = vld [vmem:[#allocation2] sm:$0xff]
    %v77 = vld [vmem:[#allocation2 + $0x8] sm:$0xff]
    %v78 = vld [vmem:[#allocation5] sm:$0xff]
    %v79 = vld [vmem:[#allocation5 + $0x8] sm:$0xff]
    %v80 = vld [vmem:[#allocation7] sm:$0xff]
    %v81 = vld [vmem:[#allocation7 + $0x8] sm:$0xff]
    %v82 = vld [vmem:[#allocation8] sm:$0xff]
    %v83 = vld [vmem:[#allocation8 + $0x8] sm:$0xff]
    %v84 = vld [vmem:[#allocation8 + $0x10] sm:$0xff]
    %v85 = vld [vmem:[#allocation8 + $0x18] sm:$0xff]
    %s86 = scalar_lea.vmem [#allocation8], 32
    %v87 = vld [vmem:[%s86] sm:$0xff]
    %v88 = vld [vmem:[%s86 + $0x8] sm:$0xff]
    %v89 = vld [vmem:[%s86 + $0x10] sm:$0xff]
    %v90 = vld [vmem:[%s86 + $0x18] sm:$0xff]
    %s91 = scalar_lea.vmem [#allocation8], 64
    %v92 = vld [vmem:[%s91] sm:$0xff]
    %v93 = vld [vmem:[%s91 + $0x8] sm:$0xff]
    %v94 = vld [vmem:[%s91 + $0x10] sm:$0xff]
    %v95 = vld [vmem:[%s91 + $0x18] sm:$0xff]
    %s96 = scalar_lea.vmem [#allocation8], 96
    %v97 = vld [vmem:[%s96] sm:$0xff]
    %v98 = vld [vmem:[%s96 + $0x8] sm:$0xff]
    %v99 = vld [vmem:[%s96 + $0x10] sm:$0xff]
    %v100 = vld [vmem:[%s96 + $0x18] sm:$0xff]
    %v101 = vld [vmem:[%s4] sm:$0x1]
    %s102 = scalar_lea.vmem %s4, 1
    %v103 = vld [vmem:[%s102] sm:$0x1]
    %s104 = scalar_lea.vmem %s4, 2
    %v105 = vld [vmem:[%s104] sm:$0x1]
    %s106 = scalar_lea.vmem %s4, 3
    %v107 = vld [vmem:[%s106] sm:$0x1]
    %v109 = vlaneseq
    %v110 = vshrl.u32 %v109, 7
    %v111 = vsub.s32 0, %v110
    %v112 = vrot.slane %v101, %v111
    %vm114 = vcmask 261120
    %v116 = vsel %vm114, %v76, 0
    %v119 = vsel %vm114, %v77, 0
    %121 = vmatprep.subr.mxu0 0.0
    %122 = vmatpush1.msra.mxu0 %v82
    %123 = vmatprep.subr.mxu0 0.0
    %124 = vmatpush1.msra.mxu0 %v83
    %125 = vmatprep.subr.mxu0 0.0
    %126 = vmatpush1.msra.mxu0 %v84
    %127 = vmatprep.subr.mxu0 0.0
    %128 = vmatpush1.msra.mxu0 %v85
    %129 = vmatprep.subr.mxu0 0.0
    %130 = vmatpush1.msra.mxu0 0.0
    %131 = vmatprep.subr.mxu0 0.0
    %132 = vmatpush1.msra.mxu0 0.0
    %133 = vmatprep.subr.mxu0 0.0
    %134 = vmatpush1.msra.mxu0 0.0
    %135 = vmatprep.subr.mxu0 0.0
    %136 = vmatpush1.msra.mxu0 0.0
    %137 = vmatprep.subr.mxu0 0.0
    %138 = vmatpush1.msra.mxu0 0.0
    %139 = vmatprep.subr.mxu0 0.0
    %140 = vmatpush1.msra.mxu0 0.0
    %141 = vmatprep.subr.mxu0 0.0
    %142 = vmatpush1.msra.mxu0 0.0
    %143 = vmatprep.subr.mxu0 0.0
    %144 = vmatpush1.msra.mxu0 0.0
    %145 = vmatprep.subr.mxu0 0.0
    %146 = vmatpush1.msra.mxu0 0.0
    %147 = vmatprep.subr.mxu0 0.0
    %148 = vmatpush1.msra.mxu0 0.0
    %149 = vmatprep.subr.mxu0 0.0
    %150 = vmatpush1.msra.mxu0 0.0
    %151 = vmatprep.subr.mxu0 0.0
    %152 = vmatpush1.msra.mxu0 0.0
    %153 = vmatprep.subr.mxu0 0.0
    %154 = vmatpush1.msra.mxu0 0.0
    %155 = vmatprep.subr.mxu0 0.0
    %156 = vmatpush1.msra.mxu0 0.0
    %157 = vmatprep.subr.mxu0 0.0
    %158 = vmatpush1.msra.mxu0 0.0
    %159 = vmatprep.subr.mxu0 0.0
    %160 = vmatpush1.msra.mxu0 0.0
    %161 = vmatprep.subr.mxu0 0.0
    %162 = vmatpush1.msra.mxu0 0.0
    %163 = vmatprep.subr.mxu0 0.0
    %164 = vmatpush1.msra.mxu0 0.0
    %165 = vmatprep.subr.mxu0 0.0
    %166 = vmatpush1.msra.mxu0 0.0
    %167 = vmatprep.subr.mxu0 0.0
    %168 = vmatpush1.msra.mxu0 0.0
    %169 = vmatprep.subr.mxu0 0.0
    %170 = vmatpush1.msra.mxu0 0.0
    %171 = vmatprep.subr.mxu0 0.0
    %172 = vmatpush1.msra.mxu0 0.0
    %173 = vmatprep.subr.mxu0 0.0
    %174 = vmatpush1.msra.mxu0 0.0
    %175 = vmatprep.subr.mxu0 0.0
    %176 = vmatpush1.msra.mxu0 0.0
    %177 = vmatprep.subr.mxu0 0.0
    %178 = vmatpush1.msra.mxu0 0.0
    %179 = vmatprep.subr.mxu0 0.0
    %180 = vmatpush1.msra.mxu0 0.0
    %181 = vmatprep.subr.mxu0 0.0
    %182 = vmatpush1.msra.mxu0 0.0
    %183 = vmatprep.subr.mxu0 0.0
    %184 = vmatpush1.msra.mxu0 0.0
    %185 = vmatprep.mubr.f32.mxu0 0.0
    %186 = vmatmul.mubr.f32.gmra.mrb[0].mxu0 %v116
    %v187 = vpop.f32.mrb[0].mxu0
    %v188 = vadd.f32 %v112, %v187
    %v189 = vpop.f32.mrb[0].mxu0
    %190 = vmatprep.mubr.f32.mxu0 0.0
    %191 = vmatmul.mubr.f32.gmra.mrb[0].mxu0 %v119
    %v192 = vpop.f32.mrb[0].mxu0
    %v193 = vadd.f32 %v112, %v192
    %v194 = vpop.f32.mrb[0].mxu0
    %195 = vdwg.mxu0
    %v197 = vlaneseq
    %v198 = vshrl.u32 %v197, 7
    %v199 = vsub.s32 0, %v198
    %v200 = vrot.slane %v103, %v199
    %v203 = vsel %vm114, %v78, 0
    %v206 = vsel %vm114, %v79, 0
    %208 = vmatprep.subr.mxu0 0.0
    %209 = vmatpush1.msra.mxu0 %v87
    %210 = vmatprep.subr.mxu0 0.0
    %211 = vmatpush1.msra.mxu0 %v88
    %212 = vmatprep.subr.mxu0 0.0
    %213 = vmatpush1.msra.mxu0 %v89
    %214 = vmatprep.subr.mxu0 0.0
    %215 = vmatpush1.msra.mxu0 %v90
    %216 = vmatprep.subr.mxu0 0.0
    %217 = vmatpush1.msra.mxu0 0.0
    %218 = vmatprep.subr.mxu0 0.0
    %219 = vmatpush1.msra.mxu0 0.0
    %220 = vmatprep.subr.mxu0 0.0
    %221 = vmatpush1.msra.mxu0 0.0
    %222 = vmatprep.subr.mxu0 0.0
    %223 = vmatpush1.msra.mxu0 0.0
    %224 = vmatprep.subr.mxu0 0.0
    %225 = vmatpush1.msra.mxu0 0.0
    %226 = vmatprep.subr.mxu0 0.0
    %227 = vmatpush1.msra.mxu0 0.0
    %228 = vmatprep.subr.mxu0 0.0
    %229 = vmatpush1.msra.mxu0 0.0
    %230 = vmatprep.subr.mxu0 0.0
    %231 = vmatpush1.msra.mxu0 0.0
    %232 = vmatprep.subr.mxu0 0.0
    %233 = vmatpush1.msra.mxu0 0.0
    %234 = vmatprep.subr.mxu0 0.0
    %235 = vmatpush1.msra.mxu0 0.0
    %236 = vmatprep.subr.mxu0 0.0
    %237 = vmatpush1.msra.mxu0 0.0
    %238 = vmatprep.subr.mxu0 0.0
    %239 = vmatpush1.msra.mxu0 0.0
    %240 = vmatprep.subr.mxu0 0.0
    %241 = vmatpush1.msra.mxu0 0.0
    %242 = vmatprep.subr.mxu0 0.0
    %243 = vmatpush1.msra.mxu0 0.0
    %244 = vmatprep.subr.mxu0 0.0
    %245 = vmatpush1.msra.mxu0 0.0
    %246 = vmatprep.subr.mxu0 0.0
    %247 = vmatpush1.msra.mxu0 0.0
    %248 = vmatprep.subr.mxu0 0.0
    %249 = vmatpush1.msra.mxu0 0.0
    %250 = vmatprep.subr.mxu0 0.0
    %251 = vmatpush1.msra.mxu0 0.0
    %252 = vmatprep.subr.mxu0 0.0
    %253 = vmatpush1.msra.mxu0 0.0
    %254 = vmatprep.subr.mxu0 0.0
    %255 = vmatpush1.msra.mxu0 0.0
    %256 = vmatprep.subr.mxu0 0.0
    %257 = vmatpush1.msra.mxu0 0.0
    %258 = vmatprep.subr.mxu0 0.0
    %259 = vmatpush1.msra.mxu0 0.0
    %260 = vmatprep.subr.mxu0 0.0
    %261 = vmatpush1.msra.mxu0 0.0
    %262 = vmatprep.subr.mxu0 0.0
    %263 = vmatpush1.msra.mxu0 0.0
    %264 = vmatprep.subr.mxu0 0.0
    %265 = vmatpush1.msra.mxu0 0.0
    %266 = vmatprep.subr.mxu0 0.0
    %267 = vmatpush1.msra.mxu0 0.0
    %268 = vmatprep.subr.mxu0 0.0
    %269 = vmatpush1.msra.mxu0 0.0
    %270 = vmatprep.subr.mxu0 0.0
    %271 = vmatpush1.msra.mxu0 0.0
    %272 = vmatprep.mubr.f32.mxu0 0.0
    %273 = vmatmul.mubr.f32.gmra.mrb[0].mxu0 %v203
    %v274 = vpop.f32.mrb[0].mxu0
    %v275 = vadd.f32 %v200, %v274
    %v276 = vpop.f32.mrb[0].mxu0
    %277 = vmatprep.mubr.f32.mxu0 0.0
    %278 = vmatmul.mubr.f32.gmra.mrb[0].mxu0 %v206
    %v279 = vpop.f32.mrb[0].mxu0
    %v280 = vadd.f32 %v200, %v279
    %v281 = vpop.f32.mrb[0].mxu0
    %282 = vdwg.mxu0
    %v284 = vlaneseq
    %v285 = vshrl.u32 %v284, 7
    %v286 = vsub.s32 0, %v285
    %v287 = vrot.slane %v105, %v286
    %v290 = vsel %vm114, %v80, 0
    %v293 = vsel %vm114, %v81, 0
    %295 = vmatprep.subr.mxu0 0.0
    %296 = vmatpush1.msra.mxu0 %v92
    %297 = vmatprep.subr.mxu0 0.0
    %298 = vmatpush1.msra.mxu0 %v93
    %299 = vmatprep.subr.mxu0 0.0
    %300 = vmatpush1.msra.mxu0 %v94
    %301 = vmatprep.subr.mxu0 0.0
    %302 = vmatpush1.msra.mxu0 %v95
    %303 = vmatprep.subr.mxu0 0.0
    %304 = vmatpush1.msra.mxu0 0.0
    %305 = vmatprep.subr.mxu0 0.0
    %306 = vmatpush1.msra.mxu0 0.0
    %307 = vmatprep.subr.mxu0 0.0
    %308 = vmatpush1.msra.mxu0 0.0
    %309 = vmatprep.subr.mxu0 0.0
    %310 = vmatpush1.msra.mxu0 0.0
    %311 = vmatprep.subr.mxu0 0.0
    %312 = vmatpush1.msra.mxu0 0.0
    %313 = vmatprep.subr.mxu0 0.0
    %314 = vmatpush1.msra.mxu0 0.0
    %315 = vmatprep.subr.mxu0 0.0
    %316 = vmatpush1.msra.mxu0 0.0
    %317 = vmatprep.subr.mxu0 0.0
    %318 = vmatpush1.msra.mxu0 0.0
    %319 = vmatprep.subr.mxu0 0.0
    %320 = vmatpush1.msra.mxu0 0.0
    %321 = vmatprep.subr.mxu0 0.0
    %322 = vmatpush1.msra.mxu0 0.0
    %323 = vmatprep.subr.mxu0 0.0
    %324 = vmatpush1.msra.mxu0 0.0
    %325 = vmatprep.subr.mxu0 0.0
    %326 = vmatpush1.msra.mxu0 0.0
    %327 = vmatprep.subr.mxu0 0.0
    %328 = vmatpush1.msra.mxu0 0.0
    %329 = vmatprep.subr.mxu0 0.0
    %330 = vmatpush1.msra.mxu0 0.0
    %331 = vmatprep.subr.mxu0 0.0
    %332 = vmatpush1.msra.mxu0 0.0
    %333 = vmatprep.subr.mxu0 0.0
    %334 = vmatpush1.msra.mxu0 0.0
    %335 = vmatprep.subr.mxu0 0.0
    %336 = vmatpush1.msra.mxu0 0.0
    %337 = vmatprep.subr.mxu0 0.0
    %338 = vmatpush1.msra.mxu0 0.0
    %339 = vmatprep.subr.mxu0 0.0
    %340 = vmatpush1.msra.mxu0 0.0
    %341 = vmatprep.subr.mxu0 0.0
    %342 = vmatpush1.msra.mxu0 0.0
    %343 = vmatprep.subr.mxu0 0.0
    %344 = vmatpush1.msra.mxu0 0.0
    %345 = vmatprep.subr.mxu0 0.0
    %346 = vmatpush1.msra.mxu0 0.0
    %347 = vmatprep.subr.mxu0 0.0
    %348 = vmatpush1.msra.mxu0 0.0
    %349 = vmatprep.subr.mxu0 0.0
    %350 = vmatpush1.msra.mxu0 0.0
    %351 = vmatprep.subr.mxu0 0.0
    %352 = vmatpush1.msra.mxu0 0.0
    %353 = vmatprep.subr.mxu0 0.0
    %354 = vmatpush1.msra.mxu0 0.0
    %355 = vmatprep.subr.mxu0 0.0
    %356 = vmatpush1.msra.mxu0 0.0
    %357 = vmatprep.subr.mxu0 0.0
    %358 = vmatpush1.msra.mxu0 0.0
    %359 = vmatprep.mubr.f32.mxu0 0.0
    %360 = vmatmul.mubr.f32.gmra.mrb[0].mxu0 %v290
    %v361 = vpop.f32.mrb[0].mxu0
    %v362 = vadd.f32 %v287, %v361
    %v363 = vpop.f32.mrb[0].mxu0
    %364 = vmatprep.mubr.f32.mxu0 0.0
    %365 = vmatmul.mubr.f32.gmra.mrb[0].mxu0 %v293
    %v366 = vpop.f32.mrb[0].mxu0
    %v367 = vadd.f32 %v287, %v366
    %v368 = vpop.f32.mrb[0].mxu0
    %369 = vdwg.mxu0
    %v370 = vmul.f32 %v188, 0.17677669
    %v371 = vmul.f32 %v193, 0.17677669
    %v372 = vlaneseq
    %v373 = vand.u32 %v372, 127
    %vm374 = vcmp.ge.s32.totalorder %v373, 0
    %vm375 = vcmp.lt.s32.totalorder %v373, 8
    %vm376 = vmand %vm374, %vm375
    %v377 = vsel %vm376, 1, 0
    %v378 = vcvt.s32.f32 %v377
    %vm379 = vcmp.ge.s32.totalorder %v373, 8
    %vm380 = vcmp.lt.s32.totalorder %v373, 16
    %vm381 = vmand %vm379, %vm380
    %v382 = vsel %vm381, 1, 0
    %v383 = vcvt.s32.f32 %v382
    %vm384 = vcmp.ge.s32.totalorder %v373, 16
    %vm385 = vcmp.lt.s32.totalorder %v373, 24
    %vm386 = vmand %vm384, %vm385
    %v387 = vsel %vm386, 1, 0
    %v388 = vcvt.s32.f32 %v387
    %vm389 = vcmp.ge.s32.totalorder %v373, 24
    %vm390 = vcmp.lt.s32.totalorder %v373, 32
    %vm391 = vmand %vm389, %vm390
    %v392 = vsel %vm391, 1, 0
    %v393 = vcvt.s32.f32 %v392
    %v394 = vmul.f32 %v370, %v378
    %v396 = vsel %vm114, %v394, 0
    %v399 = vsel %vm114, %v275, 0
    %401 = vmatprep.subr.mxu0 0.0
    %402 = vmatpush1.xpose.msra.mxu0 %v399
    %403 = vmatprep.subr.mxu0 0.0
    %404 = vmatpush1.xpose.msra.mxu0 0.0
    %405 = vmatprep.subr.mxu0 0.0
    %406 = vmatpush1.xpose.msra.mxu0 0.0
    %407 = vmatprep.subr.mxu0 0.0
    %408 = vmatpush1.xpose.msra.mxu0 0.0
    %409 = vmatprep.subr.mxu0 0.0
    %410 = vmatpush1.xpose.msra.mxu0 0.0
    %411 = vmatprep.subr.mxu0 0.0
    %412 = vmatpush1.xpose.msra.mxu0 0.0
    %413 = vmatprep.subr.mxu0 0.0
    %414 = vmatpush1.xpose.msra.mxu0 0.0
    %415 = vmatprep.subr.mxu0 0.0
    %416 = vmatpush1.xpose.msra.mxu0 0.0
    %417 = vmatprep.subr.mxu0 0.0
    %418 = vmatpush1.xpose.msra.mxu0 0.0
    %419 = vmatprep.subr.mxu0 0.0
    %420 = vmatpush1.xpose.msra.mxu0 0.0
    %421 = vmatprep.subr.mxu0 0.0
    %422 = vmatpush1.xpose.msra.mxu0 0.0
    %423 = vmatprep.subr.mxu0 0.0
    %424 = vmatpush1.xpose.msra.mxu0 0.0
    %425 = vmatprep.subr.mxu0 0.0
    %426 = vmatpush1.xpose.msra.mxu0 0.0
    %427 = vmatprep.subr.mxu0 0.0
    %428 = vmatpush1.xpose.msra.mxu0 0.0
    %429 = vmatprep.subr.mxu0 0.0
    %430 = vmatpush1.xpose.msra.mxu0 0.0
    %431 = vmatprep.subr.mxu0 0.0
    %432 = vmatpush1.xpose.msra.mxu0 0.0
    %433 = vmatprep.subr.mxu0 0.0
    %434 = vmatpush1.xpose.msra.mxu0 0.0
    %435 = vmatprep.subr.mxu0 0.0
    %436 = vmatpush1.xpose.msra.mxu0 0.0
    %437 = vmatprep.subr.mxu0 0.0
    %438 = vmatpush1.xpose.msra.mxu0 0.0
    %439 = vmatprep.subr.mxu0 0.0
    %440 = vmatpush1.xpose.msra.mxu0 0.0
    %441 = vmatprep.subr.mxu0 0.0
    %442 = vmatpush1.xpose.msra.mxu0 0.0
    %443 = vmatprep.subr.mxu0 0.0
    %444 = vmatpush1.xpose.msra.mxu0 0.0
    %445 = vmatprep.subr.mxu0 0.0
    %446 = vmatpush1.xpose.msra.mxu0 0.0
    %447 = vmatprep.subr.mxu0 0.0
    %448 = vmatpush1.xpose.msra.mxu0 0.0
    %449 = vmatprep.subr.mxu0 0.0
    %450 = vmatpush1.xpose.msra.mxu0 0.0
    %451 = vmatprep.subr.mxu0 0.0
    %452 = vmatpush1.xpose.msra.mxu0 0.0
    %453 = vmatprep.subr.mxu0 0.0
    %454 = vmatpush1.xpose.msra.mxu0 0.0
    %455 = vmatprep.subr.mxu0 0.0
    %456 = vmatpush1.xpose.msra.mxu0 0.0
    %457 = vmatprep.subr.mxu0 0.0
    %458 = vmatpush1.xpose.msra.mxu0 0.0
    %459 = vmatprep.subr.mxu0 0.0
    %460 = vmatpush1.xpose.msra.mxu0 0.0
    %461 = vmatprep.subr.mxu0 0.0
    %462 = vmatpush1.xpose.msra.mxu0 0.0
    %463 = vmatprep.subr.mxu0 0.0
    %464 = vmatpush1.xpose.msra.mxu0 0.0
    %465 = vmatprep.mubr.f32.mxu0 0.0
    %466 = vmatmul.mubr.f32.gmra.mrb[0].mxu0 %v396
    %v467 = vpop.f32.mrb[0].mxu0
    %v468 = vadd.f32 0.0, %v467
    %v469 = vpop.f32.mrb[0].mxu0
    %470 = vdwg.mxu0
    %vm471 = vcmask 64512
    %v472 = vsel %vm471, %v468, -inf
    %473 = vmax.xlane.f32.xlu0 %v472
    %v474 = vpop.xlane.xlu0 %473
    %v475 = vsub.f32 %v468, %v474
    %v476 = vmul.f32 %v475, 1.442695
    %v477 = vpow.pop %v476
    %v478 = vsel %vm471, %v477, 0.0
    %479 = vadd.xlane.f32.xlu0 %v478
    %v480 = vpop.xlane.xlu0 %479
    %v481 = vrcp.pop %v480
    %v482 = vmul.f32 %v477, %v481
    %v483 = vmul.f32 %v362, %v378
    %v484 = vmul.f32 %v370, %v383
    %v486 = vsel %vm114, %v484, 0
    %488 = vmatprep.subr.mxu0 0.0
    %489 = vmatpush1.xpose.msra.mxu0 %v399
    %490 = vmatprep.subr.mxu0 0.0
    %491 = vmatpush1.xpose.msra.mxu0 0.0
    %492 = vmatprep.subr.mxu0 0.0
    %493 = vmatpush1.xpose.msra.mxu0 0.0
    %494 = vmatprep.subr.mxu0 0.0
    %495 = vmatpush1.xpose.msra.mxu0 0.0
    %496 = vmatprep.subr.mxu0 0.0
    %497 = vmatpush1.xpose.msra.mxu0 0.0
    %498 = vmatprep.subr.mxu0 0.0
    %499 = vmatpush1.xpose.msra.mxu0 0.0
    %500 = vmatprep.subr.mxu0 0.0
    %501 = vmatpush1.xpose.msra.mxu0 0.0
    %502 = vmatprep.subr.mxu0 0.0
    %503 = vmatpush1.xpose.msra.mxu0 0.0
    %504 = vmatprep.subr.mxu0 0.0
    %505 = vmatpush1.xpose.msra.mxu0 0.0
    %506 = vmatprep.subr.mxu0 0.0
    %507 = vmatpush1.xpose.msra.mxu0 0.0
    %508 = vmatprep.subr.mxu0 0.0
    %509 = vmatpush1.xpose.msra.mxu0 0.0
    %510 = vmatprep.subr.mxu0 0.0
    %511 = vmatpush1.xpose.msra.mxu0 0.0
    %512 = vmatprep.subr.mxu0 0.0
    %513 = vmatpush1.xpose.msra.mxu0 0.0
    %514 = vmatprep.subr.mxu0 0.0
    %515 = vmatpush1.xpose.msra.mxu0 0.0
    %516 = vmatprep.subr.mxu0 0.0
    %517 = vmatpush1.xpose.msra.mxu0 0.0
    %518 = vmatprep.subr.mxu0 0.0
    %519 = vmatpush1.xpose.msra.mxu0 0.0
    %520 = vmatprep.subr.mxu0 0.0
    %521 = vmatpush1.xpose.msra.mxu0 0.0
    %522 = vmatprep.subr.mxu0 0.0
    %523 = vmatpush1.xpose.msra.mxu0 0.0
    %524 = vmatprep.subr.mxu0 0.0
    %525 = vmatpush1.xpose.msra.mxu0 0.0
    %526 = vmatprep.subr.mxu0 0.0
    %527 = vmatpush1.xpose.msra.mxu0 0.0
    %528 = vmatprep.subr.mxu0 0.0
    %529 = vmatpush1.xpose.msra.mxu0 0.0
    %530 = vmatprep.subr.mxu0 0.0
    %531 = vmatpush1.xpose.msra.mxu0 0.0
    %532 = vmatprep.subr.mxu0 0.0
    %533 = vmatpush1.xpose.msra.mxu0 0.0
    %534 = vmatprep.subr.mxu0 0.0
    %535 = vmatpush1.xpose.msra.mxu0 0.0
    %536 = vmatprep.subr.mxu0 0.0
    %537 = vmatpush1.xpose.msra.mxu0 0.0
    %538 = vmatprep.subr.mxu0 0.0
    %539 = vmatpush1.xpose.msra.mxu0 0.0
    %540 = vmatprep.subr.mxu0 0.0
    %541 = vmatpush1.xpose.msra.mxu0 0.0
    %542 = vmatprep.subr.mxu0 0.0
    %543 = vmatpush1.xpose.msra.mxu0 0.0
    %544 = vmatprep.subr.mxu0 0.0
    %545 = vmatpush1.xpose.msra.mxu0 0.0
    %546 = vmatprep.subr.mxu0 0.0
    %547 = vmatpush1.xpose.msra.mxu0 0.0
    %548 = vmatprep.subr.mxu0 0.0
    %549 = vmatpush1.xpose.msra.mxu0 0.0
    %550 = vmatprep.subr.mxu0 0.0
    %551 = vmatpush1.xpose.msra.mxu0 0.0
    %552 = vmatprep.mubr.f32.mxu0 0.0
    %553 = vmatmul.mubr.f32.gmra.mrb[0].mxu0 %v486
    %v554 = vpop.f32.mrb[0].mxu0
    %v555 = vadd.f32 0.0, %v554
    %v556 = vpop.f32.mrb[0].mxu0
    %557 = vdwg.mxu0
    %v558 = vsel %vm471, %v555, -inf
    %559 = vmax.xlane.f32.xlu0 %v558
    %v560 = vpop.xlane.xlu0 %559
    %v561 = vsub.f32 %v555, %v560
    %v562 = vmul.f32 %v561, 1.442695
    %v563 = vpow.pop %v562
    %v564 = vsel %vm471, %v563, 0.0
    %565 = vadd.xlane.f32.xlu0 %v564
    %v566 = vpop.xlane.xlu0 %565
    %v567 = vrcp.pop %v566
    %v568 = vmul.f32 %v563, %v567
    %v569 = vmul.f32 %v362, %v383
    %v571 = vsel %vm471, %v568, 0
    %573 = vmatprep.subr.mxu0 0.0
    %574 = vmatpush1.msra.mxu0 %v569
    %575 = vmatprep.subr.mxu0 0.0
    %576 = vmatpush1.msra.mxu0 0.0
    %577 = vmatprep.subr.mxu0 0.0
    %578 = vmatpush1.msra.mxu0 0.0
    %579 = vmatprep.subr.mxu0 0.0
    %580 = vmatpush1.msra.mxu0 0.0
    %581 = vmatprep.subr.mxu0 0.0
    %582 = vmatpush1.msra.mxu0 0.0
    %583 = vmatprep.subr.mxu0 0.0
    %584 = vmatpush1.msra.mxu0 0.0
    %585 = vmatprep.subr.mxu0 0.0
    %586 = vmatpush1.msra.mxu0 0.0
    %587 = vmatprep.subr.mxu0 0.0
    %588 = vmatpush1.msra.mxu0 0.0
    %589 = vmatprep.subr.mxu0 0.0
    %590 = vmatpush1.msra.mxu0 0.0
    %591 = vmatprep.subr.mxu0 0.0
    %592 = vmatpush1.msra.mxu0 0.0
    %593 = vmatprep.subr.mxu0 0.0
    %594 = vmatpush1.msra.mxu0 0.0
    %595 = vmatprep.subr.mxu0 0.0
    %596 = vmatpush1.msra.mxu0 0.0
    %597 = vmatprep.subr.mxu0 0.0
    %598 = vmatpush1.msra.mxu0 0.0
    %599 = vmatprep.subr.mxu0 0.0
    %600 = vmatpush1.msra.mxu0 0.0
    %601 = vmatprep.subr.mxu0 0.0
    %602 = vmatpush1.msra.mxu0 0.0
    %603 = vmatprep.subr.mxu0 0.0
    %604 = vmatpush1.msra.mxu0 0.0
    %605 = vmatprep.subr.mxu0 0.0
    %606 = vmatpush1.msra.mxu0 0.0
    %607 = vmatprep.subr.mxu0 0.0
    %608 = vmatpush1.msra.mxu0 0.0
    %609 = vmatprep.subr.mxu0 0.0
    %610 = vmatpush1.msra.mxu0 0.0
    %611 = vmatprep.subr.mxu0 0.0
    %612 = vmatpush1.msra.mxu0 0.0
    %613 = vmatprep.subr.mxu0 0.0
    %614 = vmatpush1.msra.mxu0 0.0
    %615 = vmatprep.subr.mxu0 0.0
    %616 = vmatpush1.msra.mxu0 0.0
    %617 = vmatprep.subr.mxu0 0.0
    %618 = vmatpush1.msra.mxu0 0.0
    %619 = vmatprep.subr.mxu0 0.0
    %620 = vmatpush1.msra.mxu0 0.0
    %621 = vmatprep.subr.mxu0 0.0
    %622 = vmatpush1.msra.mxu0 0.0
    %623 = vmatprep.subr.mxu0 0.0
    %624 = vmatpush1.msra.mxu0 0.0
    %625 = vmatprep.subr.mxu0 0.0
    %626 = vmatpush1.msra.mxu0 0.0
    %627 = vmatprep.subr.mxu0 0.0
    %628 = vmatpush1.msra.mxu0 0.0
    %629 = vmatprep.subr.mxu0 0.0
    %630 = vmatpush1.msra.mxu0 0.0
    %631 = vmatprep.subr.mxu0 0.0
    %632 = vmatpush1.msra.mxu0 0.0
    %633 = vmatprep.subr.mxu0 0.0
    %634 = vmatpush1.msra.mxu0 0.0
    %635 = vmatprep.subr.mxu0 0.0
    %636 = vmatpush1.msra.mxu0 0.0
    %637 = vmatprep.mubr.f32.mxu0 0.0
    %638 = vmatmul.mubr.f32.gmra.mrb[0].mxu0 %v571
    %v639 = vpop.f32.mrb[0].mxu0
    %v640 = vadd.f32 0.0, %v639
    %v641 = vpop.f32.mrb[0].mxu0
    %642 = vdwg.mxu0
    %v644 = vsel %vm471, %v482, 0
    %646 = vmatprep.subr.mxu0 0.0
    %647 = vmatpush1.msra.mxu0 %v483
    %648 = vmatprep.subr.mxu0 0.0
    %649 = vmatpush1.msra.mxu0 0.0
    %650 = vmatprep.subr.mxu0 0.0
    %651 = vmatpush1.msra.mxu0 0.0
    %652 = vmatprep.subr.mxu0 0.0
    %653 = vmatpush1.msra.mxu0 0.0
    %654 = vmatprep.subr.mxu0 0.0
    %655 = vmatpush1.msra.mxu0 0.0
    %656 = vmatprep.subr.mxu0 0.0
    %657 = vmatpush1.msra.mxu0 0.0
    %658 = vmatprep.subr.mxu0 0.0
    %659 = vmatpush1.msra.mxu0 0.0
    %660 = vmatprep.subr.mxu0 0.0
    %661 = vmatpush1.msra.mxu0 0.0
    %662 = vmatprep.subr.mxu0 0.0
    %663 = vmatpush1.msra.mxu0 0.0
    %664 = vmatprep.subr.mxu0 0.0
    %665 = vmatpush1.msra.mxu0 0.0
    %666 = vmatprep.subr.mxu0 0.0
    %667 = vmatpush1.msra.mxu0 0.0
    %668 = vmatprep.subr.mxu0 0.0
    %669 = vmatpush1.msra.mxu0 0.0
    %670 = vmatprep.subr.mxu0 0.0
    %671 = vmatpush1.msra.mxu0 0.0
    %672 = vmatprep.subr.mxu0 0.0
    %673 = vmatpush1.msra.mxu0 0.0
    %674 = vmatprep.subr.mxu0 0.0
    %675 = vmatpush1.msra.mxu0 0.0
    %676 = vmatprep.subr.mxu0 0.0
    %677 = vmatpush1.msra.mxu0 0.0
    %678 = vmatprep.subr.mxu0 0.0
    %679 = vmatpush1.msra.mxu0 0.0
    %680 = vmatprep.subr.mxu0 0.0
    %681 = vmatpush1.msra.mxu0 0.0
    %682 = vmatprep.subr.mxu0 0.0
    %683 = vmatpush1.msra.mxu0 0.0
    %684 = vmatprep.subr.mxu0 0.0
    %685 = vmatpush1.msra.mxu0 0.0
    %686 = vmatprep.subr.mxu0 0.0
    %687 = vmatpush1.msra.mxu0 0.0
    %688 = vmatprep.subr.mxu0 0.0
    %689 = vmatpush1.msra.mxu0 0.0
    %690 = vmatprep.subr.mxu0 0.0
    %691 = vmatpush1.msra.mxu0 0.0
    %692 = vmatprep.subr.mxu0 0.0
    %693 = vmatpush1.msra.mxu0 0.0
    %694 = vmatprep.subr.mxu0 0.0
    %695 = vmatpush1.msra.mxu0 0.0
    %696 = vmatprep.subr.mxu0 0.0
    %697 = vmatpush1.msra.mxu0 0.0
    %698 = vmatprep.subr.mxu0 0.0
    %699 = vmatpush1.msra.mxu0 0.0
    %700 = vmatprep.subr.mxu0 0.0
    %701 = vmatpush1.msra.mxu0 0.0
    %702 = vmatprep.subr.mxu0 0.0
    %703 = vmatpush1.msra.mxu0 0.0
    %704 = vmatprep.subr.mxu0 0.0
    %705 = vmatpush1.msra.mxu0 0.0
    %706 = vmatprep.subr.mxu0 0.0
    %707 = vmatpush1.msra.mxu0 0.0
    %708 = vmatprep.subr.mxu0 0.0
    %709 = vmatpush1.msra.mxu0 0.0
    %710 = vmatprep.mubr.f32.mxu0 0.0
    %711 = vmatmul.mubr.f32.gmra.mrb[0].mxu0 %v644
    %v712 = vpop.f32.mrb[0].mxu0
    %v713 = vadd.f32 %v640, %v712
    %v714 = vpop.f32.mrb[0].mxu0
    %715 = vdwg.mxu0
    %v716 = vmul.f32 %v370, %v388
    %v718 = vsel %vm114, %v716, 0
    %720 = vmatprep.subr.mxu0 0.0
    %721 = vmatpush1.xpose.msra.mxu0 %v399
    %722 = vmatprep.subr.mxu0 0.0
    %723 = vmatpush1.xpose.msra.mxu0 0.0
    %724 = vmatprep.subr.mxu0 0.0
    %725 = vmatpush1.xpose.msra.mxu0 0.0
    %726 = vmatprep.subr.mxu0 0.0
    %727 = vmatpush1.xpose.msra.mxu0 0.0
    %728 = vmatprep.subr.mxu0 0.0
    %729 = vmatpush1.xpose.msra.mxu0 0.0
    %730 = vmatprep.subr.mxu0 0.0
    %731 = vmatpush1.xpose.msra.mxu0 0.0
    %732 = vmatprep.subr.mxu0 0.0
    %733 = vmatpush1.xpose.msra.mxu0 0.0
    %734 = vmatprep.subr.mxu0 0.0
    %735 = vmatpush1.xpose.msra.mxu0 0.0
    %736 = vmatprep.subr.mxu0 0.0
    %737 = vmatpush1.xpose.msra.mxu0 0.0
    %738 = vmatprep.subr.mxu0 0.0
    %739 = vmatpush1.xpose.msra.mxu0 0.0
    %740 = vmatprep.subr.mxu0 0.0
    %741 = vmatpush1.xpose.msra.mxu0 0.0
    %742 = vmatprep.subr.mxu0 0.0
    %743 = vmatpush1.xpose.msra.mxu0 0.0
    %744 = vmatprep.subr.mxu0 0.0
    %745 = vmatpush1.xpose.msra.mxu0 0.0
    %746 = vmatprep.subr.mxu0 0.0
    %747 = vmatpush1.xpose.msra.mxu0 0.0
    %748 = vmatprep.subr.mxu0 0.0
    %749 = vmatpush1.xpose.msra.mxu0 0.0
    %750 = vmatprep.subr.mxu0 0.0
    %751 = vmatpush1.xpose.msra.mxu0 0.0
    %752 = vmatprep.subr.mxu0 0.0
    %753 = vmatpush1.xpose.msra.mxu0 0.0
    %754 = vmatprep.subr.mxu0 0.0
    %755 = vmatpush1.xpose.msra.mxu0 0.0
    %756 = vmatprep.subr.mxu0 0.0
    %757 = vmatpush1.xpose.msra.mxu0 0.0
    %758 = vmatprep.subr.mxu0 0.0
    %759 = vmatpush1.xpose.msra.mxu0 0.0
    %760 = vmatprep.subr.mxu0 0.0
    %761 = vmatpush1.xpose.msra.mxu0 0.0
    %762 = vmatprep.subr.mxu0 0.0
    %763 = vmatpush1.xpose.msra.mxu0 0.0
    %764 = vmatprep.subr.mxu0 0.0
    %765 = vmatpush1.xpose.msra.mxu0 0.0
    %766 = vmatprep.subr.mxu0 0.0
    %767 = vmatpush1.xpose.msra.mxu0 0.0
    %768 = vmatprep.subr.mxu0 0.0
    %769 = vmatpush1.xpose.msra.mxu0 0.0
    %770 = vmatprep.subr.mxu0 0.0
    %771 = vmatpush1.xpose.msra.mxu0 0.0
    %772 = vmatprep.subr.mxu0 0.0
    %773 = vmatpush1.xpose.msra.mxu0 0.0
    %774 = vmatprep.subr.mxu0 0.0
    %775 = vmatpush1.xpose.msra.mxu0 0.0
    %776 = vmatprep.subr.mxu0 0.0
    %777 = vmatpush1.xpose.msra.mxu0 0.0
    %778 = vmatprep.subr.mxu0 0.0
    %779 = vmatpush1.xpose.msra.mxu0 0.0
    %780 = vmatprep.subr.mxu0 0.0
    %781 = vmatpush1.xpose.msra.mxu0 0.0
    %782 = vmatprep.subr.mxu0 0.0
    %783 = vmatpush1.xpose.msra.mxu0 0.0
    %784 = vmatprep.mubr.f32.mxu0 0.0
    %785 = vmatmul.mubr.f32.gmra.mrb[0].mxu0 %v718
    %v786 = vpop.f32.mrb[0].mxu0
    %v787 = vadd.f32 0.0, %v786
    %v788 = vpop.f32.mrb[0].mxu0
    %789 = vdwg.mxu0
    %v790 = vsel %vm471, %v787, -inf
    %791 = vmax.xlane.f32.xlu0 %v790
    %v792 = vpop.xlane.xlu0 %791
    %v793 = vsub.f32 %v787, %v792
    %v794 = vmul.f32 %v793, 1.442695
    %v795 = vpow.pop %v794
    %v796 = vsel %vm471, %v795, 0.0
    %797 = vadd.xlane.f32.xlu0 %v796
    %v798 = vpop.xlane.xlu0 %797
    %v799 = vrcp.pop %v798
    %v800 = vmul.f32 %v795, %v799
    %v801 = vmul.f32 %v362, %v388
    %v803 = vsel %vm471, %v800, 0
    %805 = vmatprep.subr.mxu0 0.0
    %806 = vmatpush1.msra.mxu0 %v801
    %807 = vmatprep.subr.mxu0 0.0
    %808 = vmatpush1.msra.mxu0 0.0
    %809 = vmatprep.subr.mxu0 0.0
    %810 = vmatpush1.msra.mxu0 0.0
    %811 = vmatprep.subr.mxu0 0.0
    %812 = vmatpush1.msra.mxu0 0.0
    %813 = vmatprep.subr.mxu0 0.0
    %814 = vmatpush1.msra.mxu0 0.0
    %815 = vmatprep.subr.mxu0 0.0
    %816 = vmatpush1.msra.mxu0 0.0
    %817 = vmatprep.subr.mxu0 0.0
    %818 = vmatpush1.msra.mxu0 0.0
    %819 = vmatprep.subr.mxu0 0.0
    %820 = vmatpush1.msra.mxu0 0.0
    %821 = vmatprep.subr.mxu0 0.0
    %822 = vmatpush1.msra.mxu0 0.0
    %823 = vmatprep.subr.mxu0 0.0
    %824 = vmatpush1.msra.mxu0 0.0
    %825 = vmatprep.subr.mxu0 0.0
    %826 = vmatpush1.msra.mxu0 0.0
    %827 = vmatprep.subr.mxu0 0.0
    %828 = vmatpush1.msra.mxu0 0.0
    %829 = vmatprep.subr.mxu0 0.0
    %830 = vmatpush1.msra.mxu0 0.0
    %831 = vmatprep.subr.mxu0 0.0
    %832 = vmatpush1.msra.mxu0 0.0
    %833 = vmatprep.subr.mxu0 0.0
    %834 = vmatpush1.msra.mxu0 0.0
    %835 = vmatprep.subr.mxu0 0.0
    %836 = vmatpush1.msra.mxu0 0.0
    %837 = vmatprep.subr.mxu0 0.0
    %838 = vmatpush1.msra.mxu0 0.0
    %839 = vmatprep.subr.mxu0 0.0
    %840 = vmatpush1.msra.mxu0 0.0
    %841 = vmatprep.subr.mxu0 0.0
    %842 = vmatpush1.msra.mxu0 0.0
    %843 = vmatprep.subr.mxu0 0.0
    %844 = vmatpush1.msra.mxu0 0.0
    %845 = vmatprep.subr.mxu0 0.0
    %846 = vmatpush1.msra.mxu0 0.0
    %847 = vmatprep.subr.mxu0 0.0
    %848 = vmatpush1.msra.mxu0 0.0
    %849 = vmatprep.subr.mxu0 0.0
    %850 = vmatpush1.msra.mxu0 0.0
    %851 = vmatprep.subr.mxu0 0.0
    %852 = vmatpush1.msra.mxu0 0.0
    %853 = vmatprep.subr.mxu0 0.0
    %854 = vmatpush1.msra.mxu0 0.0
    %855 = vmatprep.subr.mxu0 0.0
    %856 = vmatpush1.msra.mxu0 0.0
    %857 = vmatprep.subr.mxu0 0.0
    %858 = vmatpush1.msra.mxu0 0.0
    %859 = vmatprep.subr.mxu0 0.0
    %860 = vmatpush1.msra.mxu0 0.0
    %861 = vmatprep.subr.mxu0 0.0
    %862 = vmatpush1.msra.mxu0 0.0
    %863 = vmatprep.subr.mxu0 0.0
    %864 = vmatpush1.msra.mxu0 0.0
    %865 = vmatprep.subr.mxu0 0.0
    %866 = vmatpush1.msra.mxu0 0.0
    %867 = vmatprep.subr.mxu0 0.0
    %868 = vmatpush1.msra.mxu0 0.0
    %869 = vmatprep.mubr.f32.mxu0 0.0
    %870 = vmatmul.mubr.f32.gmra.mrb[0].mxu0 %v803
    %v871 = vpop.f32.mrb[0].mxu0
    %v872 = vadd.f32 0.0, %v871
    %v873 = vpop.f32.mrb[0].mxu0
    %874 = vdwg.mxu0
    %v875 = vadd.f32 %v713, %v872
    %v876 = vmul.f32 %v370, %v393
    %v878 = vsel %vm114, %v876, 0
    %880 = vmatprep.subr.mxu0 0.0
    %881 = vmatpush1.xpose.msra.mxu0 %v399
    %882 = vmatprep.subr.mxu0 0.0
    %883 = vmatpush1.xpose.msra.mxu0 0.0
    %884 = vmatprep.subr.mxu0 0.0
    %885 = vmatpush1.xpose.msra.mxu0 0.0
    %886 = vmatprep.subr.mxu0 0.0
    %887 = vmatpush1.xpose.msra.mxu0 0.0
    %888 = vmatprep.subr.mxu0 0.0
    %889 = vmatpush1.xpose.msra.mxu0 0.0
    %890 = vmatprep.subr.mxu0 0.0
    %891 = vmatpush1.xpose.msra.mxu0 0.0
    %892 = vmatprep.subr.mxu0 0.0
    %893 = vmatpush1.xpose.msra.mxu0 0.0
    %894 = vmatprep.subr.mxu0 0.0
    %895 = vmatpush1.xpose.msra.mxu0 0.0
    %896 = vmatprep.subr.mxu0 0.0
    %897 = vmatpush1.xpose.msra.mxu0 0.0
    %898 = vmatprep.subr.mxu0 0.0
    %899 = vmatpush1.xpose.msra.mxu0 0.0
    %900 = vmatprep.subr.mxu0 0.0
    %901 = vmatpush1.xpose.msra.mxu0 0.0
    %902 = vmatprep.subr.mxu0 0.0
    %903 = vmatpush1.xpose.msra.mxu0 0.0
    %904 = vmatprep.subr.mxu0 0.0
    %905 = vmatpush1.xpose.msra.mxu0 0.0
    %906 = vmatprep.subr.mxu0 0.0
    %907 = vmatpush1.xpose.msra.mxu0 0.0
    %908 = vmatprep.subr.mxu0 0.0
    %909 = vmatpush1.xpose.msra.mxu0 0.0
    %910 = vmatprep.subr.mxu0 0.0
    %911 = vmatpush1.xpose.msra.mxu0 0.0
    %912 = vmatprep.subr.mxu0 0.0
    %913 = vmatpush1.xpose.msra.mxu0 0.0
    %914 = vmatprep.subr.mxu0 0.0
    %915 = vmatpush1.xpose.msra.mxu0 0.0
    %916 = vmatprep.subr.mxu0 0.0
    %917 = vmatpush1.xpose.msra.mxu0 0.0
    %918 = vmatprep.subr.mxu0 0.0
    %919 = vmatpush1.xpose.msra.mxu0 0.0
    %920 = vmatprep.subr.mxu0 0.0
    %921 = vmatpush1.xpose.msra.mxu0 0.0
    %922 = vmatprep.subr.mxu0 0.0
    %923 = vmatpush1.xpose.msra.mxu0 0.0
    %924 = vmatprep.subr.mxu0 0.0
    %925 = vmatpush1.xpose.msra.mxu0 0.0
    %926 = vmatprep.subr.mxu0 0.0
    %927 = vmatpush1.xpose.msra.mxu0 0.0
    %928 = vmatprep.subr.mxu0 0.0
    %929 = vmatpush1.xpose.msra.mxu0 0.0
    %930 = vmatprep.subr.mxu0 0.0
    %931 = vmatpush1.xpose.msra.mxu0 0.0
    %932 = vmatprep.subr.mxu0 0.0
    %933 = vmatpush1.xpose.msra.mxu0 0.0
    %934 = vmatprep.subr.mxu0 0.0
    %935 = vmatpush1.xpose.msra.mxu0 0.0
    %936 = vmatprep.subr.mxu0 0.0
    %937 = vmatpush1.xpose.msra.mxu0 0.0
    %938 = vmatprep.subr.mxu0 0.0
    %939 = vmatpush1.xpose.msra.mxu0 0.0
    %940 = vmatprep.subr.mxu0 0.0
    %941 = vmatpush1.xpose.msra.mxu0 0.0
    %942 = vmatprep.subr.mxu0 0.0
    %943 = vmatpush1.xpose.msra.mxu0 0.0
    %944 = vmatprep.mubr.f32.mxu0 0.0
    %945 = vmatmul.mubr.f32.gmra.mrb[0].mxu0 %v878
    %v946 = vpop.f32.mrb[0].mxu0
    %v947 = vadd.f32 0.0, %v946
    %v948 = vpop.f32.mrb[0].mxu0
    %949 = vdwg.mxu0
    %v950 = vsel %vm471, %v947, -inf
    %951 = vmax.xlane.f32.xlu0 %v950
    %v952 = vpop.xlane.xlu0 %951
    %v953 = vsub.f32 %v947, %v952
    %v954 = vmul.f32 %v953, 1.442695
    %v955 = vpow.pop %v954
    %v956 = vsel %vm471, %v955, 0.0
    %957 = vadd.xlane.f32.xlu0 %v956
    %v958 = vpop.xlane.xlu0 %957
    %v959 = vrcp.pop %v958
    %v960 = vmul.f32 %v955, %v959
    %v961 = vmul.f32 %v362, %v393
    %v963 = vsel %vm471, %v960, 0
    %965 = vmatprep.subr.mxu0 0.0
    %966 = vmatpush1.msra.mxu0 %v961
    %967 = vmatprep.subr.mxu0 0.0
    %968 = vmatpush1.msra.mxu0 0.0
    %969 = vmatprep.subr.mxu0 0.0
    %970 = vmatpush1.msra.mxu0 0.0
    %971 = vmatprep.subr.mxu0 0.0
    %972 = vmatpush1.msra.mxu0 0.0
    %973 = vmatprep.subr.mxu0 0.0
    %974 = vmatpush1.msra.mxu0 0.0
    %975 = vmatprep.subr.mxu0 0.0
    %976 = vmatpush1.msra.mxu0 0.0
    %977 = vmatprep.subr.mxu0 0.0
    %978 = vmatpush1.msra.mxu0 0.0
    %979 = vmatprep.subr.mxu0 0.0
    %980 = vmatpush1.msra.mxu0 0.0
    %981 = vmatprep.subr.mxu0 0.0
    %982 = vmatpush1.msra.mxu0 0.0
    %983 = vmatprep.subr.mxu0 0.0
    %984 = vmatpush1.msra.mxu0 0.0
    %985 = vmatprep.subr.mxu0 0.0
    %986 = vmatpush1.msra.mxu0 0.0
    %987 = vmatprep.subr.mxu0 0.0
    %988 = vmatpush1.msra.mxu0 0.0
    %989 = vmatprep.subr.mxu0 0.0
    %990 = vmatpush1.msra.mxu0 0.0
    %991 = vmatprep.subr.mxu0 0.0
    %992 = vmatpush1.msra.mxu0 0.0
    %993 = vmatprep.subr.mxu0 0.0
    %994 = vmatpush1.msra.mxu0 0.0
    %995 = vmatprep.subr.mxu0 0.0
    %996 = vmatpush1.msra.mxu0 0.0
    %997 = vmatprep.subr.mxu0 0.0
    %998 = vmatpush1.msra.mxu0 0.0
    %999 = vmatprep.subr.mxu0 0.0
    %1000 = vmatpush1.msra.mxu0 0.0
    %1001 = vmatprep.subr.mxu0 0.0
    %1002 = vmatpush1.msra.mxu0 0.0
    %1003 = vmatprep.subr.mxu0 0.0
    %1004 = vmatpush1.msra.mxu0 0.0
    %1005 = vmatprep.subr.mxu0 0.0
    %1006 = vmatpush1.msra.mxu0 0.0
    %1007 = vmatprep.subr.mxu0 0.0
    %1008 = vmatpush1.msra.mxu0 0.0
    %1009 = vmatprep.subr.mxu0 0.0
    %1010 = vmatpush1.msra.mxu0 0.0
    %1011 = vmatprep.subr.mxu0 0.0
    %1012 = vmatpush1.msra.mxu0 0.0
    %1013 = vmatprep.subr.mxu0 0.0
    %1014 = vmatpush1.msra.mxu0 0.0
    %1015 = vmatprep.subr.mxu0 0.0
    %1016 = vmatpush1.msra.mxu0 0.0
    %1017 = vmatprep.subr.mxu0 0.0
    %1018 = vmatpush1.msra.mxu0 0.0
    %1019 = vmatprep.subr.mxu0 0.0
    %1020 = vmatpush1.msra.mxu0 0.0
    %1021 = vmatprep.subr.mxu0 0.0
    %1022 = vmatpush1.msra.mxu0 0.0
    %1023 = vmatprep.subr.mxu0 0.0
    %1024 = vmatpush1.msra.mxu0 0.0
    %1025 = vmatprep.subr.mxu0 0.0
    %1026 = vmatpush1.msra.mxu0 0.0
    %1027 = vmatprep.subr.mxu0 0.0
    %1028 = vmatpush1.msra.mxu0 0.0
    %1029 = vmatprep.mubr.f32.mxu0 0.0
    %1030 = vmatmul.mubr.f32.gmra.mrb[0].mxu0 %v963
    %v1031 = vpop.f32.mrb[0].mxu0
    %v1032 = vadd.f32 0.0, %v1031
    %v1033 = vpop.f32.mrb[0].mxu0
    %1034 = vdwg.mxu0
    %v1035 = vadd.f32 %v875, %v1032
    %v1036 = vmul.f32 %v371, %v378
    %v1038 = vsel %vm114, %v1036, 0
    %v1041 = vsel %vm114, %v280, 0
    %1043 = vmatprep.subr.mxu0 0.0
    %1044 = vmatpush1.xpose.msra.mxu0 %v1041
    %1045 = vmatprep.subr.mxu0 0.0
    %1046 = vmatpush1.xpose.msra.mxu0 0.0
    %1047 = vmatprep.subr.mxu0 0.0
    %1048 = vmatpush1.xpose.msra.mxu0 0.0
    %1049 = vmatprep.subr.mxu0 0.0
    %1050 = vmatpush1.xpose.msra.mxu0 0.0
    %1051 = vmatprep.subr.mxu0 0.0
    %1052 = vmatpush1.xpose.msra.mxu0 0.0
    %1053 = vmatprep.subr.mxu0 0.0
    %1054 = vmatpush1.xpose.msra.mxu0 0.0
    %1055 = vmatprep.subr.mxu0 0.0
    %1056 = vmatpush1.xpose.msra.mxu0 0.0
    %1057 = vmatprep.subr.mxu0 0.0
    %1058 = vmatpush1.xpose.msra.mxu0 0.0
    %1059 = vmatprep.subr.mxu0 0.0
    %1060 = vmatpush1.xpose.msra.mxu0 0.0
    %1061 = vmatprep.subr.mxu0 0.0
    %1062 = vmatpush1.xpose.msra.mxu0 0.0
    %1063 = vmatprep.subr.mxu0 0.0
    %1064 = vmatpush1.xpose.msra.mxu0 0.0
    %1065 = vmatprep.subr.mxu0 0.0
    %1066 = vmatpush1.xpose.msra.mxu0 0.0
    %1067 = vmatprep.subr.mxu0 0.0
    %1068 = vmatpush1.xpose.msra.mxu0 0.0
    %1069 = vmatprep.subr.mxu0 0.0
    %1070 = vmatpush1.xpose.msra.mxu0 0.0
    %1071 = vmatprep.subr.mxu0 0.0
    %1072 = vmatpush1.xpose.msra.mxu0 0.0
    %1073 = vmatprep.subr.mxu0 0.0
    %1074 = vmatpush1.xpose.msra.mxu0 0.0
    %1075 = vmatprep.subr.mxu0 0.0
    %1076 = vmatpush1.xpose.msra.mxu0 0.0
    %1077 = vmatprep.subr.mxu0 0.0
    %1078 = vmatpush1.xpose.msra.mxu0 0.0
    %1079 = vmatprep.subr.mxu0 0.0
    %1080 = vmatpush1.xpose.msra.mxu0 0.0
    %1081 = vmatprep.subr.mxu0 0.0
    %1082 = vmatpush1.xpose.msra.mxu0 0.0
    %1083 = vmatprep.subr.mxu0 0.0
    %1084 = vmatpush1.xpose.msra.mxu0 0.0
    %1085 = vmatprep.subr.mxu0 0.0
    %1086 = vmatpush1.xpose.msra.mxu0 0.0
    %1087 = vmatprep.subr.mxu0 0.0
    %1088 = vmatpush1.xpose.msra.mxu0 0.0
    %1089 = vmatprep.subr.mxu0 0.0
    %1090 = vmatpush1.xpose.msra.mxu0 0.0
    %1091 = vmatprep.subr.mxu0 0.0
    %1092 = vmatpush1.xpose.msra.mxu0 0.0
    %1093 = vmatprep.subr.mxu0 0.0
    %1094 = vmatpush1.xpose.msra.mxu0 0.0
    %1095 = vmatprep.subr.mxu0 0.0
    %1096 = vmatpush1.xpose.msra.mxu0 0.0
    %1097 = vmatprep.subr.mxu0 0.0
    %1098 = vmatpush1.xpose.msra.mxu0 0.0
    %1099 = vmatprep.subr.mxu0 0.0
    %1100 = vmatpush1.xpose.msra.mxu0 0.0
    %1101 = vmatprep.subr.mxu0 0.0
    %1102 = vmatpush1.xpose.msra.mxu0 0.0
    %1103 = vmatprep.subr.mxu0 0.0
    %1104 = vmatpush1.xpose.msra.mxu0 0.0
    %1105 = vmatprep.subr.mxu0 0.0
    %1106 = vmatpush1.xpose.msra.mxu0 0.0
    %1107 = vmatprep.mubr.f32.mxu0 0.0
    %1108 = vmatmul.mubr.f32.gmra.mrb[0].mxu0 %v1038
    %v1109 = vpop.f32.mrb[0].mxu0
    %v1110 = vadd.f32 0.0, %v1109
    %v1111 = vpop.f32.mrb[0].mxu0
    %1112 = vdwg.mxu0
    %v1113 = vsel %vm471, %v1110, -inf
    %1114 = vmax.xlane.f32.xlu0 %v1113
    %v1115 = vpop.xlane.xlu0 %1114
    %v1116 = vsub.f32 %v1110, %v1115
    %v1117 = vmul.f32 %v1116, 1.442695
    %v1118 = vpow.pop %v1117
    %v1119 = vsel %vm471, %v1118, 0.0
    %1120 = vadd.xlane.f32.xlu0 %v1119
    %v1121 = vpop.xlane.xlu0 %1120
    %v1122 = vrcp.pop %v1121
    %v1123 = vmul.f32 %v1118, %v1122
    %v1124 = vmul.f32 %v367, %v378
    %v1125 = vmul.f32 %v371, %v383
    %v1127 = vsel %vm114, %v1125, 0
    %1129 = vmatprep.subr.mxu0 0.0
    %1130 = vmatpush1.xpose.msra.mxu0 %v1041
    %1131 = vmatprep.subr.mxu0 0.0
    %1132 = vmatpush1.xpose.msra.mxu0 0.0
    %1133 = vmatprep.subr.mxu0 0.0
    %1134 = vmatpush1.xpose.msra.mxu0 0.0
    %1135 = vmatprep.subr.mxu0 0.0
    %1136 = vmatpush1.xpose.msra.mxu0 0.0
    %1137 = vmatprep.subr.mxu0 0.0
    %1138 = vmatpush1.xpose.msra.mxu0 0.0
    %1139 = vmatprep.subr.mxu0 0.0
    %1140 = vmatpush1.xpose.msra.mxu0 0.0
    %1141 = vmatprep.subr.mxu0 0.0
    %1142 = vmatpush1.xpose.msra.mxu0 0.0
    %1143 = vmatprep.subr.mxu0 0.0
    %1144 = vmatpush1.xpose.msra.mxu0 0.0
    %1145 = vmatprep.subr.mxu0 0.0
    %1146 = vmatpush1.xpose.msra.mxu0 0.0
    %1147 = vmatprep.subr.mxu0 0.0
    %1148 = vmatpush1.xpose.msra.mxu0 0.0
    %1149 = vmatprep.subr.mxu0 0.0
    %1150 = vmatpush1.xpose.msra.mxu0 0.0
    %1151 = vmatprep.subr.mxu0 0.0
    %1152 = vmatpush1.xpose.msra.mxu0 0.0
    %1153 = vmatprep.subr.mxu0 0.0
    %1154 = vmatpush1.xpose.msra.mxu0 0.0
    %1155 = vmatprep.subr.mxu0 0.0
    %1156 = vmatpush1.xpose.msra.mxu0 0.0
    %1157 = vmatprep.subr.mxu0 0.0
    %1158 = vmatpush1.xpose.msra.mxu0 0.0
    %1159 = vmatprep.subr.mxu0 0.0
    %1160 = vmatpush1.xpose.msra.mxu0 0.0
    %1161 = vmatprep.subr.mxu0 0.0
    %1162 = vmatpush1.xpose.msra.mxu0 0.0
    %1163 = vmatprep.subr.mxu0 0.0
    %1164 = vmatpush1.xpose.msra.mxu0 0.0
    %1165 = vmatprep.subr.mxu0 0.0
    %1166 = vmatpush1.xpose.msra.mxu0 0.0
    %1167 = vmatprep.subr.mxu0 0.0
    %1168 = vmatpush1.xpose.msra.mxu0 0.0
    %1169 = vmatprep.subr.mxu0 0.0
    %1170 = vmatpush1.xpose.msra.mxu0 0.0
    %1171 = vmatprep.subr.mxu0 0.0
    %1172 = vmatpush1.xpose.msra.mxu0 0.0
    %1173 = vmatprep.subr.mxu0 0.0
    %1174 = vmatpush1.xpose.msra.mxu0 0.0
    %1175 = vmatprep.subr.mxu0 0.0
    %1176 = vmatpush1.xpose.msra.mxu0 0.0
    %1177 = vmatprep.subr.mxu0 0.0
    %1178 = vmatpush1.xpose.msra.mxu0 0.0
    %1179 = vmatprep.subr.mxu0 0.0
    %1180 = vmatpush1.xpose.msra.mxu0 0.0
    %1181 = vmatprep.subr.mxu0 0.0
    %1182 = vmatpush1.xpose.msra.mxu0 0.0
    %1183 = vmatprep.subr.mxu0 0.0
    %1184 = vmatpush1.xpose.msra.mxu0 0.0
    %1185 = vmatprep.subr.mxu0 0.0
    %1186 = vmatpush1.xpose.msra.mxu0 0.0
    %1187 = vmatprep.subr.mxu0 0.0
    %1188 = vmatpush1.xpose.msra.mxu0 0.0
    %1189 = vmatprep.subr.mxu0 0.0
    %1190 = vmatpush1.xpose.msra.mxu0 0.0
    %1191 = vmatprep.subr.mxu0 0.0
    %1192 = vmatpush1.xpose.msra.mxu0 0.0
    %1193 = vmatprep.mubr.f32.mxu0 0.0
    %1194 = vmatmul.mubr.f32.gmra.mrb[0].mxu0 %v1127
    %v1195 = vpop.f32.mrb[0].mxu0
    %v1196 = vadd.f32 0.0, %v1195
    %v1197 = vpop.f32.mrb[0].mxu0
    %1198 = vdwg.mxu0
    %v1199 = vsel %vm471, %v1196, -inf
    %1200 = vmax.xlane.f32.xlu0 %v1199
    %v1201 = vpop.xlane.xlu0 %1200
    %v1202 = vsub.f32 %v1196, %v1201
    %v1203 = vmul.f32 %v1202, 1.442695
    %v1204 = vpow.pop %v1203
    %v1205 = vsel %vm471, %v1204, 0.0
    %1206 = vadd.xlane.f32.xlu0 %v1205
    %v1207 = vpop.xlane.xlu0 %1206
    %v1208 = vrcp.pop %v1207
    %v1209 = vmul.f32 %v1204, %v1208
    %v1210 = vmul.f32 %v367, %v383
    %v1212 = vsel %vm471, %v1209, 0
    %1214 = vmatprep.subr.mxu0 0.0
    %1215 = vmatpush1.msra.mxu0 %v1210
    %1216 = vmatprep.subr.mxu0 0.0
    %1217 = vmatpush1.msra.mxu0 0.0
    %1218 = vmatprep.subr.mxu0 0.0
    %1219 = vmatpush1.msra.mxu0 0.0
    %1220 = vmatprep.subr.mxu0 0.0
    %1221 = vmatpush1.msra.mxu0 0.0
    %1222 = vmatprep.subr.mxu0 0.0
    %1223 = vmatpush1.msra.mxu0 0.0
    %1224 = vmatprep.subr.mxu0 0.0
    %1225 = vmatpush1.msra.mxu0 0.0
    %1226 = vmatprep.subr.mxu0 0.0
    %1227 = vmatpush1.msra.mxu0 0.0
    %1228 = vmatprep.subr.mxu0 0.0
    %1229 = vmatpush1.msra.mxu0 0.0
    %1230 = vmatprep.subr.mxu0 0.0
    %1231 = vmatpush1.msra.mxu0 0.0
    %1232 = vmatprep.subr.mxu0 0.0
    %1233 = vmatpush1.msra.mxu0 0.0
    %1234 = vmatprep.subr.mxu0 0.0
    %1235 = vmatpush1.msra.mxu0 0.0
    %1236 = vmatprep.subr.mxu0 0.0
    %1237 = vmatpush1.msra.mxu0 0.0
    %1238 = vmatprep.subr.mxu0 0.0
    %1239 = vmatpush1.msra.mxu0 0.0
    %1240 = vmatprep.subr.mxu0 0.0
    %1241 = vmatpush1.msra.mxu0 0.0
    %1242 = vmatprep.subr.mxu0 0.0
    %1243 = vmatpush1.msra.mxu0 0.0
    %1244 = vmatprep.subr.mxu0 0.0
    %1245 = vmatpush1.msra.mxu0 0.0
    %1246 = vmatprep.subr.mxu0 0.0
    %1247 = vmatpush1.msra.mxu0 0.0
    %1248 = vmatprep.subr.mxu0 0.0
    %1249 = vmatpush1.msra.mxu0 0.0
    %1250 = vmatprep.subr.mxu0 0.0
    %1251 = vmatpush1.msra.mxu0 0.0
    %1252 = vmatprep.subr.mxu0 0.0
    %1253 = vmatpush1.msra.mxu0 0.0
    %1254 = vmatprep.subr.mxu0 0.0
    %1255 = vmatpush1.msra.mxu0 0.0
    %1256 = vmatprep.subr.mxu0 0.0
    %1257 = vmatpush1.msra.mxu0 0.0
    %1258 = vmatprep.subr.mxu0 0.0
    %1259 = vmatpush1.msra.mxu0 0.0
    %1260 = vmatprep.subr.mxu0 0.0
    %1261 = vmatpush1.msra.mxu0 0.0
    %1262 = vmatprep.subr.mxu0 0.0
    %1263 = vmatpush1.msra.mxu0 0.0
    %1264 = vmatprep.subr.mxu0 0.0
    %1265 = vmatpush1.msra.mxu0 0.0
    %1266 = vmatprep.subr.mxu0 0.0
    %1267 = vmatpush1.msra.mxu0 0.0
    %1268 = vmatprep.subr.mxu0 0.0
    %1269 = vmatpush1.msra.mxu0 0.0
    %1270 = vmatprep.subr.mxu0 0.0
    %1271 = vmatpush1.msra.mxu0 0.0
    %1272 = vmatprep.subr.mxu0 0.0
    %1273 = vmatpush1.msra.mxu0 0.0
    %1274 = vmatprep.subr.mxu0 0.0
    %1275 = vmatpush1.msra.mxu0 0.0
    %1276 = vmatprep.subr.mxu0 0.0
    %1277 = vmatpush1.msra.mxu0 0.0
    %1278 = vmatprep.mubr.f32.mxu0 0.0
    %1279 = vmatmul.mubr.f32.gmra.mrb[0].mxu0 %v1212
    %v1280 = vpop.f32.mrb[0].mxu0
    %v1281 = vadd.f32 0.0, %v1280
    %v1282 = vpop.f32.mrb[0].mxu0
    %1283 = vdwg.mxu0
    %v1285 = vsel %vm471, %v1123, 0
    %1287 = vmatprep.subr.mxu0 0.0
    %1288 = vmatpush1.msra.mxu0 %v1124
    %1289 = vmatprep.subr.mxu0 0.0
    %1290 = vmatpush1.msra.mxu0 0.0
    %1291 = vmatprep.subr.mxu0 0.0
    %1292 = vmatpush1.msra.mxu0 0.0
    %1293 = vmatprep.subr.mxu0 0.0
    %1294 = vmatpush1.msra.mxu0 0.0
    %1295 = vmatprep.subr.mxu0 0.0
    %1296 = vmatpush1.msra.mxu0 0.0
    %1297 = vmatprep.subr.mxu0 0.0
    %1298 = vmatpush1.msra.mxu0 0.0
    %1299 = vmatprep.subr.mxu0 0.0
    %1300 = vmatpush1.msra.mxu0 0.0
    %1301 = vmatprep.subr.mxu0 0.0
    %1302 = vmatpush1.msra.mxu0 0.0
    %1303 = vmatprep.subr.mxu0 0.0
    %1304 = vmatpush1.msra.mxu0 0.0
    %1305 = vmatprep.subr.mxu0 0.0
    %1306 = vmatpush1.msra.mxu0 0.0
    %1307 = vmatprep.subr.mxu0 0.0
    %1308 = vmatpush1.msra.mxu0 0.0
    %1309 = vmatprep.subr.mxu0 0.0
    %1310 = vmatpush1.msra.mxu0 0.0
    %1311 = vmatprep.subr.mxu0 0.0
    %1312 = vmatpush1.msra.mxu0 0.0
    %1313 = vmatprep.subr.mxu0 0.0
    %1314 = vmatpush1.msra.mxu0 0.0
    %1315 = vmatprep.subr.mxu0 0.0
    %1316 = vmatpush1.msra.mxu0 0.0
    %1317 = vmatprep.subr.mxu0 0.0
    %1318 = vmatpush1.msra.mxu0 0.0
    %1319 = vmatprep.subr.mxu0 0.0
    %1320 = vmatpush1.msra.mxu0 0.0
    %1321 = vmatprep.subr.mxu0 0.0
    %1322 = vmatpush1.msra.mxu0 0.0
    %1323 = vmatprep.subr.mxu0 0.0
    %1324 = vmatpush1.msra.mxu0 0.0
    %1325 = vmatprep.subr.mxu0 0.0
    %1326 = vmatpush1.msra.mxu0 0.0
    %1327 = vmatprep.subr.mxu0 0.0
    %1328 = vmatpush1.msra.mxu0 0.0
    %1329 = vmatprep.subr.mxu0 0.0
    %1330 = vmatpush1.msra.mxu0 0.0
    %1331 = vmatprep.subr.mxu0 0.0
    %1332 = vmatpush1.msra.mxu0 0.0
    %1333 = vmatprep.subr.mxu0 0.0
    %1334 = vmatpush1.msra.mxu0 0.0
    %1335 = vmatprep.subr.mxu0 0.0
    %1336 = vmatpush1.msra.mxu0 0.0
    %1337 = vmatprep.subr.mxu0 0.0
    %1338 = vmatpush1.msra.mxu0 0.0
    %1339 = vmatprep.subr.mxu0 0.0
    %1340 = vmatpush1.msra.mxu0 0.0
    %1341 = vmatprep.subr.mxu0 0.0
    %1342 = vmatpush1.msra.mxu0 0.0
    %1343 = vmatprep.subr.mxu0 0.0
    %1344 = vmatpush1.msra.mxu0 0.0
    %1345 = vmatprep.subr.mxu0 0.0
    %1346 = vmatpush1.msra.mxu0 0.0
    %1347 = vmatprep.subr.mxu0 0.0
    %1348 = vmatpush1.msra.mxu0 0.0
    %1349 = vmatprep.subr.mxu0 0.0
    %1350 = vmatpush1.msra.mxu0 0.0
    %1351 = vmatprep.mubr.f32.mxu0 0.0
    %1352 = vmatmul.mubr.f32.gmra.mrb[0].mxu0 %v1285
    %v1353 = vpop.f32.mrb[0].mxu0
    %v1354 = vadd.f32 %v1281, %v1353
    %v1355 = vpop.f32.mrb[0].mxu0
    %1356 = vdwg.mxu0
    %v1357 = vmul.f32 %v371, %v388
    %v1359 = vsel %vm114, %v1357, 0
    %1361 = vmatprep.subr.mxu0 0.0
    %1362 = vmatpush1.xpose.msra.mxu0 %v1041
    %1363 = vmatprep.subr.mxu0 0.0
    %1364 = vmatpush1.xpose.msra.mxu0 0.0
    %1365 = vmatprep.subr.mxu0 0.0
    %1366 = vmatpush1.xpose.msra.mxu0 0.0
    %1367 = vmatprep.subr.mxu0 0.0
    %1368 = vmatpush1.xpose.msra.mxu0 0.0
    %1369 = vmatprep.subr.mxu0 0.0
    %1370 = vmatpush1.xpose.msra.mxu0 0.0
    %1371 = vmatprep.subr.mxu0 0.0
    %1372 = vmatpush1.xpose.msra.mxu0 0.0
    %1373 = vmatprep.subr.mxu0 0.0
    %1374 = vmatpush1.xpose.msra.mxu0 0.0
    %1375 = vmatprep.subr.mxu0 0.0
    %1376 = vmatpush1.xpose.msra.mxu0 0.0
    %1377 = vmatprep.subr.mxu0 0.0
    %1378 = vmatpush1.xpose.msra.mxu0 0.0
    %1379 = vmatprep.subr.mxu0 0.0
    %1380 = vmatpush1.xpose.msra.mxu0 0.0
    %1381 = vmatprep.subr.mxu0 0.0
    %1382 = vmatpush1.xpose.msra.mxu0 0.0
    %1383 = vmatprep.subr.mxu0 0.0
    %1384 = vmatpush1.xpose.msra.mxu0 0.0
    %1385 = vmatprep.subr.mxu0 0.0
    %1386 = vmatpush1.xpose.msra.mxu0 0.0
    %1387 = vmatprep.subr.mxu0 0.0
    %1388 = vmatpush1.xpose.msra.mxu0 0.0
    %1389 = vmatprep.subr.mxu0 0.0
    %1390 = vmatpush1.xpose.msra.mxu0 0.0
    %1391 = vmatprep.subr.mxu0 0.0
    %1392 = vmatpush1.xpose.msra.mxu0 0.0
    %1393 = vmatprep.subr.mxu0 0.0
    %1394 = vmatpush1.xpose.msra.mxu0 0.0
    %1395 = vmatprep.subr.mxu0 0.0
    %1396 = vmatpush1.xpose.msra.mxu0 0.0
    %1397 = vmatprep.subr.mxu0 0.0
    %1398 = vmatpush1.xpose.msra.mxu0 0.0
    %1399 = vmatprep.subr.mxu0 0.0
    %1400 = vmatpush1.xpose.msra.mxu0 0.0
    %1401 = vmatprep.subr.mxu0 0.0
    %1402 = vmatpush1.xpose.msra.mxu0 0.0
    %1403 = vmatprep.subr.mxu0 0.0
    %1404 = vmatpush1.xpose.msra.mxu0 0.0
    %1405 = vmatprep.subr.mxu0 0.0
    %1406 = vmatpush1.xpose.msra.mxu0 0.0
    %1407 = vmatprep.subr.mxu0 0.0
    %1408 = vmatpush1.xpose.msra.mxu0 0.0
    %1409 = vmatprep.subr.mxu0 0.0
    %1410 = vmatpush1.xpose.msra.mxu0 0.0
    %1411 = vmatprep.subr.mxu0 0.0
    %1412 = vmatpush1.xpose.msra.mxu0 0.0
    %1413 = vmatprep.subr.mxu0 0.0
    %1414 = vmatpush1.xpose.msra.mxu0 0.0
    %1415 = vmatprep.subr.mxu0 0.0
    %1416 = vmatpush1.xpose.msra.mxu0 0.0
    %1417 = vmatprep.subr.mxu0 0.0
    %1418 = vmatpush1.xpose.msra.mxu0 0.0
    %1419 = vmatprep.subr.mxu0 0.0
    %1420 = vmatpush1.xpose.msra.mxu0 0.0
    %1421 = vmatprep.subr.mxu0 0.0
    %1422 = vmatpush1.xpose.msra.mxu0 0.0
    %1423 = vmatprep.subr.mxu0 0.0
    %1424 = vmatpush1.xpose.msra.mxu0 0.0
    %1425 = vmatprep.mubr.f32.mxu0 0.0
    %1426 = vmatmul.mubr.f32.gmra.mrb[0].mxu0 %v1359
    %v1427 = vpop.f32.mrb[0].mxu0
    %v1428 = vadd.f32 0.0, %v1427
    %v1429 = vpop.f32.mrb[0].mxu0
    %1430 = vdwg.mxu0
    %v1431 = vsel %vm471, %v1428, -inf
    %1432 = vmax.xlane.f32.xlu0 %v1431
    %v1433 = vpop.xlane.xlu0 %1432
    %v1434 = vsub.f32 %v1428, %v1433
    %v1435 = vmul.f32 %v1434, 1.442695
    %v1436 = vpow.pop %v1435
    %v1437 = vsel %vm471, %v1436, 0.0
    %1438 = vadd.xlane.f32.xlu0 %v1437
    %v1439 = vpop.xlane.xlu0 %1438
    %v1440 = vrcp.pop %v1439
    %v1441 = vmul.f32 %v1436, %v1440
    %v1442 = vmul.f32 %v367, %v388
    %v1444 = vsel %vm471, %v1441, 0
    %1446 = vmatprep.subr.mxu0 0.0
    %1447 = vmatpush1.msra.mxu0 %v1442
    %1448 = vmatprep.subr.mxu0 0.0
    %1449 = vmatpush1.msra.mxu0 0.0
    %1450 = vmatprep.subr.mxu0 0.0
    %1451 = vmatpush1.msra.mxu0 0.0
    %1452 = vmatprep.subr.mxu0 0.0
    %1453 = vmatpush1.msra.mxu0 0.0
    %1454 = vmatprep.subr.mxu0 0.0
    %1455 = vmatpush1.msra.mxu0 0.0
    %1456 = vmatprep.subr.mxu0 0.0
    %1457 = vmatpush1.msra.mxu0 0.0
    %1458 = vmatprep.subr.mxu0 0.0
    %1459 = vmatpush1.msra.mxu0 0.0
    %1460 = vmatprep.subr.mxu0 0.0
    %1461 = vmatpush1.msra.mxu0 0.0
    %1462 = vmatprep.subr.mxu0 0.0
    %1463 = vmatpush1.msra.mxu0 0.0
    %1464 = vmatprep.subr.mxu0 0.0
    %1465 = vmatpush1.msra.mxu0 0.0
    %1466 = vmatprep.subr.mxu0 0.0
    %1467 = vmatpush1.msra.mxu0 0.0
    %1468 = vmatprep.subr.mxu0 0.0
    %1469 = vmatpush1.msra.mxu0 0.0
    %1470 = vmatprep.subr.mxu0 0.0
    %1471 = vmatpush1.msra.mxu0 0.0
    %1472 = vmatprep.subr.mxu0 0.0
    %1473 = vmatpush1.msra.mxu0 0.0
    %1474 = vmatprep.subr.mxu0 0.0
    %1475 = vmatpush1.msra.mxu0 0.0
    %1476 = vmatprep.subr.mxu0 0.0
    %1477 = vmatpush1.msra.mxu0 0.0
    %1478 = vmatprep.subr.mxu0 0.0
    %1479 = vmatpush1.msra.mxu0 0.0
    %1480 = vmatprep.subr.mxu0 0.0
    %1481 = vmatpush1.msra.mxu0 0.0
    %1482 = vmatprep.subr.mxu0 0.0
    %1483 = vmatpush1.msra.mxu0 0.0
    %1484 = vmatprep.subr.mxu0 0.0
    %1485 = vmatpush1.msra.mxu0 0.0
    %1486 = vmatprep.subr.mxu0 0.0
    %1487 = vmatpush1.msra.mxu0 0.0
    %1488 = vmatprep.subr.mxu0 0.0
    %1489 = vmatpush1.msra.mxu0 0.0
    %1490 = vmatprep.subr.mxu0 0.0
    %1491 = vmatpush1.msra.mxu0 0.0
    %1492 = vmatprep.subr.mxu0 0.0
    %1493 = vmatpush1.msra.mxu0 0.0
    %1494 = vmatprep.subr.mxu0 0.0
    %1495 = vmatpush1.msra.mxu0 0.0
    %1496 = vmatprep.subr.mxu0 0.0
    %1497 = vmatpush1.msra.mxu0 0.0
    %1498 = vmatprep.subr.mxu0 0.0
    %1499 = vmatpush1.msra.mxu0 0.0
    %1500 = vmatprep.subr.mxu0 0.0
    %1501 = vmatpush1.msra.mxu0 0.0
    %1502 = vmatprep.subr.mxu0 0.0
    %1503 = vmatpush1.msra.mxu0 0.0
    %1504 = vmatprep.subr.mxu0 0.0
    %1505 = vmatpush1.msra.mxu0 0.0
    %1506 = vmatprep.subr.mxu0 0.0
    %1507 = vmatpush1.msra.mxu0 0.0
    %1508 = vmatprep.subr.mxu0 0.0
    %1509 = vmatpush1.msra.mxu0 0.0
    %1510 = vmatprep.mubr.f32.mxu0 0.0
    %1511 = vmatmul.mubr.f32.gmra.mrb[0].mxu0 %v1444
    %v1512 = vpop.f32.mrb[0].mxu0
    %v1513 = vadd.f32 0.0, %v1512
    %v1514 = vpop.f32.mrb[0].mxu0
    %1515 = vdwg.mxu0
    %v1516 = vadd.f32 %v1354, %v1513
    %v1517 = vmul.f32 %v371, %v393
    %v1519 = vsel %vm114, %v1517, 0
    %1521 = vmatprep.subr.mxu0 0.0
    %1522 = vmatpush1.xpose.msra.mxu0 %v1041
    %1523 = vmatprep.subr.mxu0 0.0
    %1524 = vmatpush1.xpose.msra.mxu0 0.0
    %1525 = vmatprep.subr.mxu0 0.0
    %1526 = vmatpush1.xpose.msra.mxu0 0.0
    %1527 = vmatprep.subr.mxu0 0.0
    %1528 = vmatpush1.xpose.msra.mxu0 0.0
    %1529 = vmatprep.subr.mxu0 0.0
    %1530 = vmatpush1.xpose.msra.mxu0 0.0
    %1531 = vmatprep.subr.mxu0 0.0
    %1532 = vmatpush1.xpose.msra.mxu0 0.0
    %1533 = vmatprep.subr.mxu0 0.0
    %1534 = vmatpush1.xpose.msra.mxu0 0.0
    %1535 = vmatprep.subr.mxu0 0.0
    %1536 = vmatpush1.xpose.msra.mxu0 0.0
    %1537 = vmatprep.subr.mxu0 0.0
    %1538 = vmatpush1.xpose.msra.mxu0 0.0
    %1539 = vmatprep.subr.mxu0 0.0
    %1540 = vmatpush1.xpose.msra.mxu0 0.0
    %1541 = vmatprep.subr.mxu0 0.0
    %1542 = vmatpush1.xpose.msra.mxu0 0.0
    %1543 = vmatprep.subr.mxu0 0.0
    %1544 = vmatpush1.xpose.msra.mxu0 0.0
    %1545 = vmatprep.subr.mxu0 0.0
    %1546 = vmatpush1.xpose.msra.mxu0 0.0
    %1547 = vmatprep.subr.mxu0 0.0
    %1548 = vmatpush1.xpose.msra.mxu0 0.0
    %1549 = vmatprep.subr.mxu0 0.0
    %1550 = vmatpush1.xpose.msra.mxu0 0.0
    %1551 = vmatprep.subr.mxu0 0.0
    %1552 = vmatpush1.xpose.msra.mxu0 0.0
    %1553 = vmatprep.subr.mxu0 0.0
    %1554 = vmatpush1.xpose.msra.mxu0 0.0
    %1555 = vmatprep.subr.mxu0 0.0
    %1556 = vmatpush1.xpose.msra.mxu0 0.0
    %1557 = vmatprep.subr.mxu0 0.0
    %1558 = vmatpush1.xpose.msra.mxu0 0.0
    %1559 = vmatprep.subr.mxu0 0.0
    %1560 = vmatpush1.xpose.msra.mxu0 0.0
    %1561 = vmatprep.subr.mxu0 0.0
    %1562 = vmatpush1.xpose.msra.mxu0 0.0
    %1563 = vmatprep.subr.mxu0 0.0
    %1564 = vmatpush1.xpose.msra.mxu0 0.0
    %1565 = vmatprep.subr.mxu0 0.0
    %1566 = vmatpush1.xpose.msra.mxu0 0.0
    %1567 = vmatprep.subr.mxu0 0.0
    %1568 = vmatpush1.xpose.msra.mxu0 0.0
    %1569 = vmatprep.subr.mxu0 0.0
    %1570 = vmatpush1.xpose.msra.mxu0 0.0
    %1571 = vmatprep.subr.mxu0 0.0
    %1572 = vmatpush1.xpose.msra.mxu0 0.0
    %1573 = vmatprep.subr.mxu0 0.0
    %1574 = vmatpush1.xpose.msra.mxu0 0.0
    %1575 = vmatprep.subr.mxu0 0.0
    %1576 = vmatpush1.xpose.msra.mxu0 0.0
    %1577 = vmatprep.subr.mxu0 0.0
    %1578 = vmatpush1.xpose.msra.mxu0 0.0
    %1579 = vmatprep.subr.mxu0 0.0
    %1580 = vmatpush1.xpose.msra.mxu0 0.0
    %1581 = vmatprep.subr.mxu0 0.0
    %1582 = vmatpush1.xpose.msra.mxu0 0.0
    %1583 = vmatprep.subr.mxu0 0.0
    %1584 = vmatpush1.xpose.msra.mxu0 0.0
    %1585 = vmatprep.mubr.f32.mxu0 0.0
    %1586 = vmatmul.mubr.f32.gmra.mrb[0].mxu0 %v1519
    %v1587 = vpop.f32.mrb[0].mxu0
    %v1588 = vadd.f32 0.0, %v1587
    %v1589 = vpop.f32.mrb[0].mxu0
    %1590 = vdwg.mxu0
    %v1591 = vsel %vm471, %v1588, -inf
    %1592 = vmax.xlane.f32.xlu0 %v1591
    %v1593 = vpop.xlane.xlu0 %1592
    %v1594 = vsub.f32 %v1588, %v1593
    %v1595 = vmul.f32 %v1594, 1.442695
    %v1596 = vpow.pop %v1595
    %v1597 = vsel %vm471, %v1596, 0.0
    %1598 = vadd.xlane.f32.xlu0 %v1597
    %v1599 = vpop.xlane.xlu0 %1598
    %v1600 = vrcp.pop %v1599
    %v1601 = vmul.f32 %v1596, %v1600
    %v1602 = vmul.f32 %v367, %v393
    %v1604 = vsel %vm471, %v1601, 0
    %1606 = vmatprep.subr.mxu0 0.0
    %1607 = vmatpush1.msra.mxu0 %v1602
    %1608 = vmatprep.subr.mxu0 0.0
    %1609 = vmatpush1.msra.mxu0 0.0
    %1610 = vmatprep.subr.mxu0 0.0
    %1611 = vmatpush1.msra.mxu0 0.0
    %1612 = vmatprep.subr.mxu0 0.0
    %1613 = vmatpush1.msra.mxu0 0.0
    %1614 = vmatprep.subr.mxu0 0.0
    %1615 = vmatpush1.msra.mxu0 0.0
    %1616 = vmatprep.subr.mxu0 0.0
    %1617 = vmatpush1.msra.mxu0 0.0
    %1618 = vmatprep.subr.mxu0 0.0
    %1619 = vmatpush1.msra.mxu0 0.0
    %1620 = vmatprep.subr.mxu0 0.0
    %1621 = vmatpush1.msra.mxu0 0.0
    %1622 = vmatprep.subr.mxu0 0.0
    %1623 = vmatpush1.msra.mxu0 0.0
    %1624 = vmatprep.subr.mxu0 0.0
    %1625 = vmatpush1.msra.mxu0 0.0
    %1626 = vmatprep.subr.mxu0 0.0
    %1627 = vmatpush1.msra.mxu0 0.0
    %1628 = vmatprep.subr.mxu0 0.0
    %1629 = vmatpush1.msra.mxu0 0.0
    %1630 = vmatprep.subr.mxu0 0.0
    %1631 = vmatpush1.msra.mxu0 0.0
    %1632 = vmatprep.subr.mxu0 0.0
    %1633 = vmatpush1.msra.mxu0 0.0
    %1634 = vmatprep.subr.mxu0 0.0
    %1635 = vmatpush1.msra.mxu0 0.0
    %1636 = vmatprep.subr.mxu0 0.0
    %1637 = vmatpush1.msra.mxu0 0.0
    %1638 = vmatprep.subr.mxu0 0.0
    %1639 = vmatpush1.msra.mxu0 0.0
    %1640 = vmatprep.subr.mxu0 0.0
    %1641 = vmatpush1.msra.mxu0 0.0
    %1642 = vmatprep.subr.mxu0 0.0
    %1643 = vmatpush1.msra.mxu0 0.0
    %1644 = vmatprep.subr.mxu0 0.0
    %1645 = vmatpush1.msra.mxu0 0.0
    %1646 = vmatprep.subr.mxu0 0.0
    %1647 = vmatpush1.msra.mxu0 0.0
    %1648 = vmatprep.subr.mxu0 0.0
    %1649 = vmatpush1.msra.mxu0 0.0
    %1650 = vmatprep.subr.mxu0 0.0
    %1651 = vmatpush1.msra.mxu0 0.0
    %1652 = vmatprep.subr.mxu0 0.0
    %1653 = vmatpush1.msra.mxu0 0.0
    %1654 = vmatprep.subr.mxu0 0.0
    %1655 = vmatpush1.msra.mxu0 0.0
    %1656 = vmatprep.subr.mxu0 0.0
    %1657 = vmatpush1.msra.mxu0 0.0
    %1658 = vmatprep.subr.mxu0 0.0
    %1659 = vmatpush1.msra.mxu0 0.0
    %1660 = vmatprep.subr.mxu0 0.0
    %1661 = vmatpush1.msra.mxu0 0.0
    %1662 = vmatprep.subr.mxu0 0.0
    %1663 = vmatpush1.msra.mxu0 0.0
    %1664 = vmatprep.subr.mxu0 0.0
    %1665 = vmatpush1.msra.mxu0 0.0
    %1666 = vmatprep.subr.mxu0 0.0
    %1667 = vmatpush1.msra.mxu0 0.0
    %1668 = vmatprep.subr.mxu0 0.0
    %1669 = vmatpush1.msra.mxu0 0.0
    %1670 = vmatprep.mubr.f32.mxu0 0.0
    %1671 = vmatmul.mubr.f32.gmra.mrb[0].mxu0 %v1604
    %v1672 = vpop.f32.mrb[0].mxu0
    %v1673 = vadd.f32 0.0, %v1672
    %v1674 = vpop.f32.mrb[0].mxu0
    %1675 = vdwg.mxu0
    %v1676 = vadd.f32 %v1516, %v1673
    %v1678 = vlaneseq
    %v1679 = vshrl.u32 %v1678, 7
    %v1680 = vsub.s32 0, %v1679
    %v1681 = vrot.slane %v107, %v1680
    %v1684 = vsel %vm114, %v1035, 0
    %v1687 = vsel %vm114, %v1676, 0
    %1689 = vmatprep.subr.mxu0 0.0
    %1690 = vmatpush1.msra.mxu0 %v97
    %1691 = vmatprep.subr.mxu0 0.0
    %1692 = vmatpush1.msra.mxu0 %v98
    %1693 = vmatprep.subr.mxu0 0.0
    %1694 = vmatpush1.msra.mxu0 %v99
    %1695 = vmatprep.subr.mxu0 0.0
    %1696 = vmatpush1.msra.mxu0 %v100
    %1697 = vmatprep.subr.mxu0 0.0
    %1698 = vmatpush1.msra.mxu0 0.0
    %1699 = vmatprep.subr.mxu0 0.0
    %1700 = vmatpush1.msra.mxu0 0.0
    %1701 = vmatprep.subr.mxu0 0.0
    %1702 = vmatpush1.msra.mxu0 0.0
    %1703 = vmatprep.subr.mxu0 0.0
    %1704 = vmatpush1.msra.mxu0 0.0
    %1705 = vmatprep.subr.mxu0 0.0
    %1706 = vmatpush1.msra.mxu0 0.0
    %1707 = vmatprep.subr.mxu0 0.0
    %1708 = vmatpush1.msra.mxu0 0.0
    %1709 = vmatprep.subr.mxu0 0.0
    %1710 = vmatpush1.msra.mxu0 0.0
    %1711 = vmatprep.subr.mxu0 0.0
    %1712 = vmatpush1.msra.mxu0 0.0
    %1713 = vmatprep.subr.mxu0 0.0
    %1714 = vmatpush1.msra.mxu0 0.0
    %1715 = vmatprep.subr.mxu0 0.0
    %1716 = vmatpush1.msra.mxu0 0.0
    %1717 = vmatprep.subr.mxu0 0.0
    %1718 = vmatpush1.msra.mxu0 0.0
    %1719 = vmatprep.subr.mxu0 0.0
    %1720 = vmatpush1.msra.mxu0 0.0
    %1721 = vmatprep.subr.mxu0 0.0
    %1722 = vmatpush1.msra.mxu0 0.0
    %1723 = vmatprep.subr.mxu0 0.0
    %1724 = vmatpush1.msra.mxu0 0.0
    %1725 = vmatprep.subr.mxu0 0.0
    %1726 = vmatpush1.msra.mxu0 0.0
    %1727 = vmatprep.subr.mxu0 0.0
    %1728 = vmatpush1.msra.mxu0 0.0
    %1729 = vmatprep.subr.mxu0 0.0
    %1730 = vmatpush1.msra.mxu0 0.0
    %1731 = vmatprep.subr.mxu0 0.0
    %1732 = vmatpush1.msra.mxu0 0.0
    %1733 = vmatprep.subr.mxu0 0.0
    %1734 = vmatpush1.msra.mxu0 0.0
    %1735 = vmatprep.subr.mxu0 0.0
    %1736 = vmatpush1.msra.mxu0 0.0
    %1737 = vmatprep.subr.mxu0 0.0
    %1738 = vmatpush1.msra.mxu0 0.0
    %1739 = vmatprep.subr.mxu0 0.0
    %1740 = vmatpush1.msra.mxu0 0.0
    %1741 = vmatprep.subr.mxu0 0.0
    %1742 = vmatpush1.msra.mxu0 0.0
    %1743 = vmatprep.subr.mxu0 0.0
    %1744 = vmatpush1.msra.mxu0 0.0
    %1745 = vmatprep.subr.mxu0 0.0
    %1746 = vmatpush1.msra.mxu0 0.0
    %1747 = vmatprep.subr.mxu0 0.0
    %1748 = vmatpush1.msra.mxu0 0.0
    %1749 = vmatprep.subr.mxu0 0.0
    %1750 = vmatpush1.msra.mxu0 0.0
    %1751 = vmatprep.subr.mxu0 0.0
    %1752 = vmatpush1.msra.mxu0 0.0
    %1753 = vmatprep.mubr.f32.mxu0 0.0
    %1754 = vmatmul.mubr.f32.gmra.mrb[0].mxu0 %v1684
    %v1755 = vpop.f32.mrb[0].mxu0
    %v1756 = vadd.f32 %v1681, %v1755
    %v1757 = vpop.f32.mrb[0].mxu0
    %1758 = vmatprep.mubr.f32.mxu0 0.0
    %1759 = vmatmul.mubr.f32.gmra.mrb[0].mxu0 %v1687
    %v1760 = vpop.f32.mrb[0].mxu0
    %v1761 = vadd.f32 %v1681, %v1760
    %v1762 = vpop.f32.mrb[0].mxu0
    %1763 = vdwg.mxu0
    %1764 = vst.msk [vmem:[#allocation10] sm:$0xff] %vm114, %v1756
    %1765 = vst.msk [vmem:[#allocation10 + $0x8] sm:$0xff] %vm114, %v1761
    // Predicated region
    $region38: #{tpu_custom_call.1} parent=1 // pred_check
      _
    $region39: #{tpu_custom_call.1} parent=1 // pred_check_branch
      %1767 = sbr.rel (0) target = $region41
    $region40: #{tpu_custom_call.1} parent=1 // pred_region
      %s1769 = ssub.s32 256, 256
      %1770 = vsyncadd [#allocation4], %s1769
      %s1771 = sshll.u32 [#allocation10], 4
      %s1772 = int_to_ptr.vmem [resolvable:$true] %s1771
      %1777 = dma.vmem_to_hbm [thread:$0]  %s1772, 256, %s5, [#allocation4], 128, 128, 8
    $region41: #{tpu_custom_call.1} parent=1 // pred_fallthru
      _
    // Predicated region
    $region42: #{tpu_custom_call.1} parent=1 // pred_check
      _
    $region43: #{tpu_custom_call.1} parent=1 // pred_check_branch
      %1779 = sbr.rel (0) target = $region45
    $region44: #{tpu_custom_call.1} parent=1 // pred_region
      %1780 = dma.done [#allocation4], 256
    $region45: #{tpu_custom_call.1} parent=1 // pred_fallthru
      _
    %1781 = vsyncpa [#allocation3], 1
    %1782 = vsyncpa [#allocation6], 1
    %1783 = vsyncpa [#allocation9], 1
    %1784 = vsyncpa [#allocation4], 1

</llo_original>
